<compile_context>
chip_gen: v5e
topology: v5e:2x2
jax: 0.10.0
libtpu: 0.0.40
codegen_flags: <defaults>
</compile_context>

<pallas_src>
import math

import jax
import jax.numpy as jnp
from jax import lax
from jax.experimental import pallas as pl
from jax.experimental.pallas import tpu as pltpu

_INV_SQRT2 = 1.0 / math.sqrt(2.0)


def _round_up(x, m):
    return (x + m - 1) // m * m


def _mlp_kernel(x_ref, w1_ref, b1_ref, w2_ref, b2_ref, o_ref, acc_ref):
    """Grid: (M tiles, hidden-dim tiles). Hidden axis is a reduction."""
    k = pl.program_id(1)

    @pl.when(k == 0)
    def _init():
        acc_ref[...] = jnp.zeros_like(acc_ref)

    # fc1 chunk: (tm, Cin_p) @ (Cin_p, tk) -> f32 accumulate on MXU.
    h = jnp.dot(x_ref[...], w1_ref[...], preferred_element_type=jnp.float32)
    h = h + b1_ref[...].astype(jnp.float32)

    # Exact GELU (PyTorch nn.GELU default), in f32 on VPU/EUP.
    h = 0.5 * h * (1.0 + lax.erf(h * _INV_SQRT2))

    # Dropout p=0.0 -> identity (no-op).

    # fc2 partial product, accumulated over hidden-dim chunks.
    acc_ref[...] += jnp.dot(h.astype(w2_ref.dtype), w2_ref[...],
                            preferred_element_type=jnp.float32)

    @pl.when(k == pl.num_programs(1) - 1)
    def _finalize():
        o_ref[...] = (acc_ref[...] + b2_ref[...].astype(jnp.float32)
                      ).astype(o_ref.dtype)


def mlp_pallas_2d(x2d, w1_t, b1, w2_t, b2, *, tile_m=512, tile_k=512,
                  matmul_dtype=None, out_dtype=None):
    """Core kernel on a flattened (M, Cin) activation.

    w1_t: (Cin, Ch), b1: (Ch,), w2_t: (Ch, Cout), b2: (Cout,).
    matmul_dtype: optional MXU operand dtype (e.g. jnp.bfloat16); accumulation
    and GELU stay f32. Returns (M, Cout) in out_dtype (default: x dtype).
    """
    M, Cin = x2d.shape
    Cin_w, Ch = w1_t.shape
    Ch_w, Cout = w2_t.shape
    assert Cin == Cin_w and Ch == Ch_w

    out_dtype = out_dtype or x2d.dtype
    mm_dtype = matmul_dtype or x2d.dtype

    # Lane-dense (multiple-of-128) channel padding; zero padding is exact:
    # padded Cin columns / Ch rows / Cout columns contribute nothing.
    Cin_p = _round_up(Cin, 128)
    Ch_p = _round_up(Ch, 128)
    Cout_p = _round_up(Cout, 128)

    # Hidden-dim tile: largest multiple of 128 that divides Ch_p and <= tile_k.
    tk = min(_round_up(max(tile_k, 128), 128), Ch_p)
    while Ch_p % tk != 0:
        tk -= 128

    # M tile: clamp to the (8-aligned) problem size, pad M up to a multiple.
    tm = min(max(tile_m, 8), _round_up(M, 8))
    tm = _round_up(tm, 8)
    M_p = _round_up(M, tm)

    xp = jnp.pad(x2d, ((0, M_p - M), (0, Cin_p - Cin))).astype(mm_dtype)
    w1p = jnp.pad(w1_t, ((0, Cin_p - Cin), (0, Ch_p - Ch))).astype(mm_dtype)
    w2p = jnp.pad(w2_t, ((0, Ch_p - Ch), (0, Cout_p - Cout))).astype(mm_dtype)
    b1p = jnp.pad(b1, (0, Ch_p - Ch)).astype(jnp.float32).reshape(1, Ch_p)
    b2p = jnp.pad(b2, (0, Cout_p - Cout)).astype(jnp.float32).reshape(1, Cout_p)

    grid = (M_p // tm, Ch_p // tk)

    # VMEM budget: double-buffered pipelined blocks + f32 accumulator + the
    # per-step f32 GELU intermediate; 2x margin, clamped to [16 MiB, 64 MiB]
    # (64 MiB is v7x physical VMEM per TensorCore).
    mm_b = jnp.dtype(mm_dtype).itemsize
    out_b = jnp.dtype(out_dtype).itemsize
    est = (2 * tm * Cin_p * mm_b          # x blocks
           + 2 * tm * Cout_p * out_b      # output blocks
           + 2 * Cin_p * tk * mm_b        # w1 blocks
           + 2 * tk * Cout_p * mm_b       # w2 blocks
           + 2 * 8 * (Ch_p + Cout_p) * 4  # bias blocks (sublane-padded)
           + tm * Cout_p * 4              # accumulator scratch
           + tm * tk * 4)                 # GELU intermediate
    vmem_limit = int(min(64 * 1024 * 1024, max(16 * 1024 * 1024, 2 * est)))

    out = pl.pallas_call(
        _mlp_kernel,
        out_shape=jax.ShapeDtypeStruct((M_p, Cout_p), out_dtype),
        grid_spec=pltpu.PrefetchScalarGridSpec(
            num_scalar_prefetch=0,
            grid=grid,
            in_specs=[
                pl.BlockSpec((tm, Cin_p), lambda i, k: (i, 0)),
                pl.BlockSpec((Cin_p, tk), lambda i, k: (0, k)),
                pl.BlockSpec((1, tk), lambda i, k: (0, k)),
                pl.BlockSpec((tk, Cout_p), lambda i, k: (k, 0)),
                pl.BlockSpec((1, Cout_p), lambda i, k: (0, 0)),
            ],
            out_specs=pl.BlockSpec((tm, Cout_p), lambda i, k: (i, 0)),
            scratch_shapes=[pltpu.VMEM((tm, Cout_p), jnp.float32)],
        ),
        compiler_params=pltpu.CompilerParams(
            dimension_semantics=("parallel", "arbitrary"),
            vmem_limit_bytes=vmem_limit,
            # Let XLA fuse the wrapper-side transpose/pad of x into the
            # pallas_call input instead of materializing x2d in HBM.
            allow_input_fusion=[True, False, False, False, False],
        ),
    )(xp, w1p, b1p, w2p, b2p)

    return out[:M, :Cout]


def mlp_pallas_nhwc(x_nhwc, w1, b1, w2, b2, **kw):
    """Preferred entry point: NHWC activations (no transposes needed).
    w1: (Ch, Cin) fc1 conv weight (1x1 kernel dims squeezed), w2: (Cout, Ch)."""
    N, H, W, Cin = x_nhwc.shape
    x2d = x_nhwc.reshape(N * H * W, Cin)
    out2d = mlp_pallas_2d(x2d, jnp.transpose(w1), b1, jnp.transpose(w2), b2, **kw)
    return out2d.reshape(N, H, W, -1)


def mlp_pallas(x_nchw, w1, b1, w2, b2, **kw):
    """NCHW entry point matching the PyTorch module layout.
    Prefer mlp_pallas_nhwc inside an NHWC model to avoid the transposes."""
    x_nhwc = jnp.transpose(x_nchw, (0, 2, 3, 1))
    out_nhwc = mlp_pallas_nhwc(x_nhwc, w1, b1, w2, b2, **kw)
    return jnp.transpose(out_nhwc, (0, 3, 1, 2))


def mlp_reference(x_nchw, w1, b1, w2, b2):
    """Plain-JAX f32 reference mirroring the PyTorch forward."""
    N, Cin, H, W = x_nchw.shape
    x2d = jnp.transpose(x_nchw, (0, 2, 3, 1)).reshape(-1, Cin)
    h = x2d @ w1.T + b1
    h = 0.5 * h * (1.0 + lax.erf(h / jnp.sqrt(2.0)))
    o = h @ w2.T + b2
    return jnp.transpose(o.reshape(N, H, W, -1), (0, 3, 1, 2))


if __name__ == "__main__":
    key = jax.random.PRNGKey(0)
    k_x, k_w1, k_b1, k_w2, k_b2, k_x2 = jax.random.split(key, 6)

    # Small shapes consistent with the module: hidden = 2*Cin, out = Cin.
    N, Cin, H, W = 2, 16, 16, 16          # M = N*H*W = 512
    Ch, Cout = 32, 16

    x = jax.random.normal(k_x, (N, Cin, H, W), dtype=jnp.float32)
    # Conv2d weights with the 1x1 kernel dims squeezed: (Cout, Cin).
    w1 = jax.random.normal(k_w1, (Ch, Cin), dtype=jnp.float32) * 0.1
    b1 = jax.random.normal(k_b1, (Ch,), dtype=jnp.float32) * 0.1
    w2 = jax.random.normal(k_w2, (Cout, Ch), dtype=jnp.float32) * 0.1
    b2 = jax.random.normal(k_b2, (Cout,), dtype=jnp.float32) * 0.1

    # 1) f32 path, tile_m=256 so the M axis has 2 tiles (both TCs on v7x).
    out = mlp_pallas(x, w1, b1, w2, b2, tile_m=256)
    out = jax.block_until_ready(out)
    ref = mlp_reference(x, w1, b1, w2, b2)
    assert out.shape == (N, Cout, H, W)
    assert jnp.allclose(out, ref, atol=1e-4, rtol=1e-4), "fp32 mismatch vs reference"

    # 2) bf16-MXU path with a non-tile-multiple M (exercises padding path).
    x2 = jax.random.normal(k_x2, (N, Cin, 13, 11), dtype=jnp.float32)
    out_bf16 = mlp_pallas(x2, w1, b1, w2, b2, matmul_dtype=jnp.bfloat16)
    out_bf16 = jax.block_until_ready(out_bf16)
    ref2 = mlp_reference(x2, w1, b1, w2, b2)
    assert out_bf16.shape == (N, Cout, 13, 11)
    assert jnp.allclose(out_bf16, ref2, atol=5e-2, rtol=5e-2), "bf16 mismatch vs reference"

    print("KERNEL_OK")
</pallas_src>

<mosaic_0001>
module attributes {stable_mosaic.version = 11 : i64} {
  func.func @_mlp_kernel(%arg0: i32, %arg1: i32, %arg2: memref<256x128xf32, #tpu.memory_space<vmem>>, %arg3: memref<128x128xf32, #tpu.memory_space<vmem>>, %arg4: memref<1x128xf32, #tpu.memory_space<vmem>>, %arg5: memref<128x128xf32, #tpu.memory_space<vmem>>, %arg6: memref<1x128xf32, #tpu.memory_space<vmem>>, %arg7: memref<256x128xf32, #tpu.memory_space<vmem>>, %arg8: memref<256x128xf32, #tpu.memory_space<vmem>>) attributes {dimension_semantics = [#tpu.dimension_semantics<parallel>, #tpu.dimension_semantics<arbitrary>], iteration_bounds = array<i64: 2, 1>, scalar_prefetch = 0 : i64, scratch_operands = 1 : i64, tpu.core_type = #tpu.core_type<tc>, window_params = [{transform_indices = @transform_0, window_bounds = array<i64: 256, 128>}, {transform_indices = @transform_1, window_bounds = array<i64: 128, 128>}, {transform_indices = @transform_2, window_bounds = array<i64: 1, 128>}, {transform_indices = @transform_3, window_bounds = array<i64: 128, 128>}, {pipeline_mode = #tpu.pipeline_mode<synchronous>, transform_indices = @transform_4, window_bounds = array<i64: 1, 128>}, {transform_indices = @transform_5, window_bounds = array<i64: 256, 128>}]} {
    %c0_i32 = arith.constant 0 : i32
    %0 = arith.cmpi eq, %arg1, %c0_i32 : i32
    %1 = arith.extui %0 : i1 to i32
    %c0_i32_0 = arith.constant 0 : i32
    %2 = arith.cmpi ne, %1, %c0_i32_0 : i32
    scf.if %2 {
      %cst_18 = arith.constant 0.000000e+00 : f32
      %25 = vector.broadcast %cst_18 : f32 to vector<256x128xf32>
      %c0_19 = arith.constant 0 : index
      %c0_20 = arith.constant 0 : index
      %26 = vector.load %arg8[%c0_19, %c0_20] : memref<256x128xf32, #tpu.memory_space<vmem>>, vector<256x128xf32>
      tpu.vector_store %arg8[%c0_19, %c0_20], %25 {strides = array<i32>} : memref<256x128xf32, #tpu.memory_space<vmem>>, vector<256x128xf32>,
    } else {
    }
    %c0 = arith.constant 0 : index
    %c0_1 = arith.constant 0 : index
    %3 = vector.load %arg2[%c0, %c0_1] : memref<256x128xf32, #tpu.memory_space<vmem>>, vector<256x128xf32>
    %c0_2 = arith.constant 0 : index
    %c0_3 = arith.constant 0 : index
    %4 = vector.load %arg3[%c0_2, %c0_3] : memref<128x128xf32, #tpu.memory_space<vmem>>, vector<128x128xf32>
    %cst = arith.constant dense<0.000000e+00> : vector<256x128xf32>
    %5 = tpu.matmul %3, %4, %cst {dimension_numbers = #tpu.dot_dimension_numbers<[1], [0], [0], [1], [0, 0, 1, 1], [], []>} : vector<256x128xf32>, vector<128x128xf32>, vector<256x128xf32> -> vector<256x128xf32>
    %c0_4 = arith.constant 0 : index
    %c0_5 = arith.constant 0 : index
    %6 = vector.load %arg4[%c0_4, %c0_5] : memref<1x128xf32, #tpu.memory_space<vmem>>, vector<1x128xf32>
    %7 = vector.broadcast %6 : vector<1x128xf32> to vector<256x128xf32>
    %8 = arith.addf %5, %7 : vector<256x128xf32>
    %cst_6 = arith.constant 5.000000e-01 : f32
    %9 = vector.broadcast %cst_6 : f32 to vector<256x128xf32>
    %10 = arith.mulf %9, %8 : vector<256x128xf32>
    %cst_7 = arith.constant 0.707106769 : f32
    %11 = vector.broadcast %cst_7 : f32 to vector<256x128xf32>
    %12 = arith.mulf %8, %11 : vector<256x128xf32>
    %13 = math.erf %12 : vector<256x128xf32>
    %cst_8 = arith.constant 1.000000e+00 : f32
    %14 = vector.broadcast %cst_8 : f32 to vector<256x128xf32>
    %15 = arith.addf %14, %13 : vector<256x128xf32>
    %16 = arith.mulf %10, %15 : vector<256x128xf32>
    %c0_9 = arith.constant 0 : index
    %c0_10 = arith.constant 0 : index
    %17 = vector.load %arg8[%c0_9, %c0_10] : memref<256x128xf32, #tpu.memory_space<vmem>>, vector<256x128xf32>
    %c0_11 = arith.constant 0 : index
    %c0_12 = arith.constant 0 : index
    %18 = vector.load %arg5[%c0_11, %c0_12] : memref<128x128xf32, #tpu.memory_space<vmem>>, vector<128x128xf32>
    %cst_13 = arith.constant dense<0.000000e+00> : vector<256x128xf32>
    %19 = tpu.matmul %16, %18, %cst_13 {dimension_numbers = #tpu.dot_dimension_numbers<[1], [0], [0], [1], [0, 0, 1, 1], [], []>} : vector<256x128xf32>, vector<128x128xf32>, vector<256x128xf32> -> vector<256x128xf32>
    %20 = arith.addf %17, %19 : vector<256x128xf32>
    %c0_14 = arith.constant 0 : index
    %c0_15 = arith.constant 0 : index
    %21 = vector.load %arg8[%c0_14, %c0_15] : memref<256x128xf32, #tpu.memory_space<vmem>>, vector<256x128xf32>
    tpu.vector_store %arg8[%c0_14, %c0_15], %20 {strides = array<i32>} : memref<256x128xf32, #tpu.memory_space<vmem>>, vector<256x128xf32>,
    %c0_i32_16 = arith.constant 0 : i32
    %22 = arith.cmpi eq, %arg1, %c0_i32_16 : i32
    %23 = arith.extui %22 : i1 to i32
    %c0_i32_17 = arith.constant 0 : i32
    %24 = arith.cmpi ne, %23, %c0_i32_17 : i32
    scf.if %24 {
      %c0_18 = arith.constant 0 : index
      %c0_19 = arith.constant 0 : index
      %25 = vector.load %arg8[%c0_18, %c0_19] : memref<256x128xf32, #tpu.memory_space<vmem>>, vector<256x128xf32>
      %c0_20 = arith.constant 0 : index
      %c0_21 = arith.constant 0 : index
      %26 = vector.load %arg6[%c0_20, %c0_21] : memref<1x128xf32, #tpu.memory_space<vmem>>, vector<1x128xf32>
      %27 = vector.broadcast %26 : vector<1x128xf32> to vector<256x128xf32>
      %28 = arith.addf %25, %27 : vector<256x128xf32>
      %c0_22 = arith.constant 0 : index
      %c0_23 = arith.constant 0 : index
      %29 = vector.load %arg7[%c0_22, %c0_23] : memref<256x128xf32, #tpu.memory_space<vmem>>, vector<256x128xf32>
      tpu.vector_store %arg7[%c0_22, %c0_23], %28 {strides = array<i32>} : memref<256x128xf32, #tpu.memory_space<vmem>>, vector<256x128xf32>,
    } else {
    }
    return
  }
  func.func @transform_0(%arg0: i32, %arg1: i32) -> (i32, i32) {
    %c0_i32 = arith.constant 0 : i32
    %c0_i32_0 = arith.constant 0 : i32
    return %arg0, %c0_i32 : i32, i32
  }
  func.func @transform_1(%arg0: i32, %arg1: i32) -> (i32, i32) {
    %c0_i32 = arith.constant 0 : i32
    %c0_i32_0 = arith.constant 0 : i32
    return %c0_i32, %arg1 : i32, i32
  }
  func.func @transform_2(%arg0: i32, %arg1: i32) -> (i32, i32) {
    %c0_i32 = arith.constant 0 : i32
    %c0_i32_0 = arith.constant 0 : i32
    return %c0_i32, %arg1 : i32, i32
  }
  func.func @transform_3(%arg0: i32, %arg1: i32) -> (i32, i32) {
    %c0_i32 = arith.constant 0 : i32
    %c0_i32_0 = arith.constant 0 : i32
    return %arg1, %c0_i32 : i32, i32
  }
  func.func @transform_4(%arg0: i32, %arg1: i32) -> (i32, i32) {
    %c0_i32 = arith.constant 0 : i32
    %c0_i32_0 = arith.constant 0 : i32
    %c0_i32_1 = arith.constant 0 : i32
    return %c0_i32, %c0_i32_0 : i32, i32
  }
  func.func @transform_5(%arg0: i32, %arg1: i32) -> (i32, i32) {
    %c0_i32 = arith.constant 0 : i32
    %c0_i32_0 = arith.constant 0 : i32
    return %arg0, %c0_i32 : i32, i32
  }
}

</mosaic_0001>

<llo_original>
// kernel: tpu_custom_call.1
$region0: #{tpu_custom_call.1}
  #allocation0 [shape = 'u32[]', space=smem, size = 0x4, offset = 0x4, fixed_abs, tag = 'smem constant byte address 0x4 - core index']
  #allocation1 [shape = 'u32[72,128]{1,0:T(1,128)}', space=vmem, size = 0x9000, scoped, tag = 'internal scratch']
  #allocation2 [shape = 'f32[256,128]{1,0:T(8,128)}', space=vmem, size = 0x20000, scoped, tag = 'scratch operand']
  %s0 = inlined_call_operand.hbm [shape: f32[512,128], index: 0, kind: input, shape index: {}]
  %s1 = inlined_call_operand.hbm [shape: f32[128,128], index: 1, kind: input, shape index: {}]
  %s2 = inlined_call_operand.vmem [shape: f32[1,128], index: 2, kind: input, shape index: {}]
  %s3 = inlined_call_operand.hbm [shape: f32[128,128], index: 3, kind: input, shape index: {}]
  %s4 = inlined_call_operand.vmem [shape: f32[1,128], index: 4, kind: input, shape index: {}]
  %s5 = inlined_call_operand.hbm [shape: f32[512,128], index: 5, kind: output, shape index: {}]
  %s6 = sld [smem:[#allocation0]]
  $region73: #{tpu_custom_call.1} parent=0
    _
  %s8 = ssub.s32 1, %s6
  %s9 = scalar_select 0, %s8, %s6
  $region1: #{tpu_custom_call.1} parent=0
    #allocation3 [shape = 'u8[262144]{0}', space=vmem, size = 0x40000, scoped, tag = 'input window, operand 0']
    #allocation4 [shape = 's32[2]{0}', space=sflag, size = 0x8, scoped, tag = 'scoped memory for tpu_custom_call.1']
    #allocation5 [shape = 's32[2]{0}', space=sflag, size = 0x8, scoped, tag = 'scoped memory for tpu_custom_call.1']
    #allocation6 [shape = 'u8[65536]{0}', space=vmem, size = 0x10000, scoped, tag = 'input window, operand 1, single buffered']
    #allocation7 [shape = 's32[1]{0}', space=sflag, size = 0x4, scoped, tag = 'scoped memory for tpu_custom_call.1']
    #allocation8 [shape = 'u8[65536]{0}', space=vmem, size = 0x10000, scoped, tag = 'input window, operand 3, single buffered']
    #allocation9 [shape = 'u8[262144]{0}', space=vmem, size = 0x40000, scoped, tag = 'output window, operand 0']
    %10 = vsyncpa [#allocation4], 0
    %s11 = scalar_lea.sflag [#allocation4], 1
    %12 = vsyncpa %s11, 0
    %13 = vsyncpa [#allocation7], 0
    %14 = vsyncpa [#allocation5], 0
    %s15 = scalar_lea.sflag [#allocation5], 1
    %16 = vsyncpa %s15, 0
    loop: start=0, step=1, limit=4
    $region2: #{tpu_custom_call.1} parent=1 // loop_pre_header
      _
    $region3: #{tpu_custom_call.1} parent=1 // loop_header
      %s18 = sphi 0, %s22
      %p19 = scmp.ge.s32.totalorder %s18, 4
      %s25 = sphi 0, %s37
      %s26 = sphi 0, %s33
      %s27 = sphi 0, %s25
      %s28 = sphi 0, %s26
      %s29 = sphi 0, %s27
      %s30 = sphi 0, %s28
      %s40 = sphi 0, %s42
      %s43 = sphi 0, %s40
      %s44 = sphi 0, %s43
      %s60 = sphi 0, %s44
      %s66 = sphi 0, %s68
      %s69 = sphi 0, %s66
      %s70 = sphi 0, %s69
      %s86 = sphi 0, %s70
      %s92 = sphi 0, %s94
      %s95 = sphi 0, %s92
      %s96 = sphi 0, %s95
      %s112 = sphi 0, %s96
      %s118 = sphi 0, %s120
      %s121 = sphi 0, %s118
      %s122 = sphi 0, %s121
      %s138 = sphi 0, %s122
      %s142 = sphi 0, %s142
      %s144 = sphi 0, %s142
      %s145 = sphi 0, %s144
      %s159 = sphi 0, %s145
      %s165 = sphi 0, %s167
      %s168 = sphi 0, %s165
      %s169 = sphi 0, %s168
      %s185 = sphi 0, %s169
    $region4: #{tpu_custom_call.1} parent=1 // loop_header_branch
      %21 = sbr.rel (%p19) target = $region8
    $region5: #{tpu_custom_call.1} parent=1 // loop_body
      %s23 = ssub.s32 %s18, 1
      %s24 = ssub.s32 %s18, 2
      %s31 = sadd.s32 1, %s26
      %p32 = scmp.ge.s32.totalorder %s31, 1
      %s33 = scalar_select %p32, 0, %s31
      %s34 = sadd.s32 1, %s25
      %s35 = scalar_select %p32, %s34, %s25
      %p36 = scmp.ge.s32.totalorder %s35, 2
      %s37 = scalar_select %p36, 0, %s35
      %s38 = ssub.s32 %s25, %s37
      %p39 = scmp.eq.s32.totalorder %s38, 0
      %s41 = sadd.s32 %s40, 1
      %s42 = scalar_select %p39, %s40, %s41
      %p45 = pneg %p39
      %p46 = scmp.eq.s32.totalorder %s18, 1
      %p47 = por %p45, %p46
      %p48 = scmp.ne.s32.totalorder %s40, %s43
      %p49 = scmp.eq.s32.totalorder %s18, 0
      %p50 = por %p48, %p49
      %p51 = scmp.ne.s32.totalorder %s40, %s43
      %p52 = scmp.eq.s32.totalorder %s23, 1
      %p53 = por %p51, %p52
      %p54 = scmp.ne.s32.totalorder %s43, %s44
      %p55 = scmp.eq.s32.totalorder %s23, 0
      %p56 = por %p54, %p55
      %p57 = scmp.ne.s32.totalorder %s43, %s44
      %p58 = scmp.eq.s32.totalorder %s24, 1
      %p59 = por %p57, %p58
      %p61 = scmp.ne.s32.totalorder %s44, %s60
      %p62 = scmp.eq.s32.totalorder %s24, 0
      %p63 = por %p61, %p62
      %s64 = ssub.s32 %s26, %s33
      %p65 = scmp.eq.s32.totalorder %s64, 0
      %s67 = sadd.s32 %s66, 1
      %s68 = scalar_select %p65, %s66, %s67
      %p71 = pneg %p65
      %p72 = scmp.eq.s32.totalorder %s18, 1
      %p73 = por %p71, %p72
      %p74 = scmp.ne.s32.totalorder %s66, %s69
      %p75 = scmp.eq.s32.totalorder %s18, 0
      %p76 = por %p74, %p75
      %p77 = scmp.ne.s32.totalorder %s66, %s69
      %p78 = scmp.eq.s32.totalorder %s23, 1
      %p79 = por %p77, %p78
      %p80 = scmp.ne.s32.totalorder %s69, %s70
      %p81 = scmp.eq.s32.totalorder %s23, 0
      %p82 = por %p80, %p81
      %p83 = scmp.ne.s32.totalorder %s69, %s70
      %p84 = scmp.eq.s32.totalorder %s24, 1
      %p85 = por %p83, %p84
      %p87 = scmp.ne.s32.totalorder %s70, %s86
      %p88 = scmp.eq.s32.totalorder %s24, 0
      %p89 = por %p87, %p88
      %s90 = ssub.s32 %s26, %s33
      %p91 = scmp.eq.s32.totalorder %s90, 0
      %s93 = sadd.s32 %s92, 1
      %s94 = scalar_select %p91, %s92, %s93
      %p97 = pneg %p91
      %p98 = scmp.eq.s32.totalorder %s18, 1
      %p99 = por %p97, %p98
      %p100 = scmp.ne.s32.totalorder %s92, %s95
      %p101 = scmp.eq.s32.totalorder %s18, 0
      %p102 = por %p100, %p101
      %p103 = scmp.ne.s32.totalorder %s92, %s95
      %p104 = scmp.eq.s32.totalorder %s23, 1
      %p105 = por %p103, %p104
      %p106 = scmp.ne.s32.totalorder %s95, %s96
      %p107 = scmp.eq.s32.totalorder %s23, 0
      %p108 = por %p106, %p107
      %p109 = scmp.ne.s32.totalorder %s95, %s96
      %p110 = scmp.eq.s32.totalorder %s24, 1
      %p111 = por %p109, %p110
      %p113 = scmp.ne.s32.totalorder %s96, %s112
      %p114 = scmp.eq.s32.totalorder %s24, 0
      %p115 = por %p113, %p114
      %s116 = ssub.s32 %s26, %s33
      %p117 = scmp.eq.s32.totalorder %s116, 0
      %s119 = sadd.s32 %s118, 1
      %s120 = scalar_select %p117, %s118, %s119
      %p123 = pneg %p117
      %p124 = scmp.eq.s32.totalorder %s18, 1
      %p125 = por %p123, %p124
      %p126 = scmp.ne.s32.totalorder %s118, %s121
      %p127 = scmp.eq.s32.totalorder %s18, 0
      %p128 = por %p126, %p127
      %p129 = scmp.ne.s32.totalorder %s118, %s121
      %p130 = scmp.eq.s32.totalorder %s23, 1
      %p131 = por %p129, %p130
      %p132 = scmp.ne.s32.totalorder %s121, %s122
      %p133 = scmp.eq.s32.totalorder %s23, 0
      %p134 = por %p132, %p133
      %p135 = scmp.ne.s32.totalorder %s121, %s122
      %p136 = scmp.eq.s32.totalorder %s24, 1
      %p137 = por %p135, %p136
      %p139 = scmp.ne.s32.totalorder %s122, %s138
      %p140 = scmp.eq.s32.totalorder %s24, 0
      %p141 = por %p139, %p140
      %s143 = sadd.s32 %s142, 1
      %p146 = scmp.eq.s32.totalorder %s18, 1
      %p147 = scmp.ne.s32.totalorder %s142, %s144
      %p148 = scmp.eq.s32.totalorder %s18, 0
      %p149 = por %p147, %p148
      %p150 = scmp.ne.s32.totalorder %s142, %s144
      %p151 = scmp.eq.s32.totalorder %s23, 1
      %p152 = por %p150, %p151
      %p153 = scmp.ne.s32.totalorder %s144, %s145
      %p154 = scmp.eq.s32.totalorder %s23, 0
      %p155 = por %p153, %p154
      %p156 = scmp.ne.s32.totalorder %s144, %s145
      %p157 = scmp.eq.s32.totalorder %s24, 1
      %p158 = por %p156, %p157
      %p160 = scmp.ne.s32.totalorder %s145, %s159
      %p161 = scmp.eq.s32.totalorder %s24, 0
      %p162 = por %p160, %p161
      %s163 = ssub.s32 %s25, %s37
      %p164 = scmp.eq.s32.totalorder %s163, 0
      %s166 = sadd.s32 %s165, 1
      %s167 = scalar_select %p164, %s165, %s166
      %p170 = pneg %p164
      %p171 = scmp.eq.s32.totalorder %s18, 1
      %p172 = por %p170, %p171
      %p173 = scmp.ne.s32.totalorder %s165, %s168
      %p174 = scmp.eq.s32.totalorder %s18, 0
      %p175 = por %p173, %p174
      %p176 = scmp.ne.s32.totalorder %s165, %s168
      %p177 = scmp.eq.s32.totalorder %s23, 1
      %p178 = por %p176, %p177
      %p179 = scmp.ne.s32.totalorder %s168, %s169
      %p180 = scmp.eq.s32.totalorder %s23, 0
      %p181 = por %p179, %p180
      %p182 = scmp.ne.s32.totalorder %s168, %s169
      %p183 = scmp.eq.s32.totalorder %s24, 1
      %p184 = por %p182, %p183
      %p186 = scmp.ne.s32.totalorder %s169, %s185
      %p187 = scmp.eq.s32.totalorder %s24, 0
      %p188 = por %p186, %p187
      %p189 = scmp.le.s32.totalorder 1, %s18
      %p190 = scmp.lt.s32.totalorder %s18, 3
      %p191 = pnand %p189, %p190
      %p192 = pneg %p191
      // Predicated region
      $region9: #{tpu_custom_call.1} parent=5 // pred_check
        _
      $region10: #{tpu_custom_call.1} parent=5 // pred_check_branch
        %194 = sbr.rel (%p191) target = $region12
      $region11: #{tpu_custom_call.1} parent=5 // pred_region
        %s195 = ssub.s32 %s18, 1
        // Predicated region
        $region13: #{tpu_custom_call.1} parent=11 // pred_check
          %p196 = pneg %p82
        $region14: #{tpu_custom_call.1} parent=11 // pred_check_branch
          %198 = sbr.rel (%p196) target = $region16
        $region15: #{tpu_custom_call.1} parent=11 // pred_region
          %200 = vsyncadd [#allocation7], 0
          %s201 = smul.addr %s28, 8
          %s202 = scalar_lea.hbm %s1, %s201
          %s203 = sshll.u32 %s202, 4
          %s204 = int_to_ptr.hbm [resolvable:$true] %s203
          %s205 = sshll.u32 [#allocation6], 4
          %s206 = int_to_ptr.vmem [resolvable:$true] %s205
          %211 = dma.hbm_to_vmem [thread:$0]  %s204, 2048, %s206, [#allocation7], 128, 128, 8
        $region16: #{tpu_custom_call.1} parent=11 // pred_fallthru
          _
        // Predicated region
        $region17: #{tpu_custom_call.1} parent=11 // pred_check
          %p212 = pneg %p108
        $region18: #{tpu_custom_call.1} parent=11 // pred_check_branch
          %214 = sbr.rel (%p212) target = $region20
        $region19: #{tpu_custom_call.1} parent=11 // pred_region
          %p215 = scmp.lt.s32.totalorder %s28, 0
          %s216 = scalar_select %p215, %s28, 0
          %s217 = scalar_lea.vmem %s2, %s216
        $region20: #{tpu_custom_call.1} parent=11 // pred_fallthru
          _
        // Predicated region
        $region21: #{tpu_custom_call.1} parent=11 // pred_check
          %p218 = pneg %p134
        $region22: #{tpu_custom_call.1} parent=11 // pred_check_branch
          %220 = sbr.rel (%p218) target = $region24
        $region23: #{tpu_custom_call.1} parent=11 // pred_region
          %s221 = smul.u32 16, %s28
          %223 = vsyncadd [#allocation7], 0
          %s224 = smul.addr %s221, 8
          %s225 = scalar_lea.hbm %s3, %s224
          %s226 = sshll.u32 %s225, 4
          %s227 = int_to_ptr.hbm [resolvable:$true] %s226
          %s228 = sshll.u32 [#allocation8], 4
          %s229 = int_to_ptr.vmem [resolvable:$true] %s228
          %234 = dma.hbm_to_vmem [thread:$0]  %s227, 2048, %s229, [#allocation7], 128, 128, 8
        $region24: #{tpu_custom_call.1} parent=11 // pred_fallthru
          _
        // Predicated region
        $region25: #{tpu_custom_call.1} parent=11 // pred_check
          %p235 = pneg %p155
        $region26: #{tpu_custom_call.1} parent=11 // pred_check_branch
          %237 = sbr.rel (%p235) target = $region28
        $region27: #{tpu_custom_call.1} parent=11 // pred_region
          _
        $region28: #{tpu_custom_call.1} parent=11 // pred_fallthru
          _
      $region12: #{tpu_custom_call.1} parent=5 // pred_fallthru
        _
      %p238 = scmp.lt.s32.totalorder %s18, 2
      // Predicated region
      $region29: #{tpu_custom_call.1} parent=5 // pred_check
        %p239 = pneg %p238
      $region30: #{tpu_custom_call.1} parent=5 // pred_check_branch
        %241 = sbr.rel (%p239) target = $region32
      $region31: #{tpu_custom_call.1} parent=5 // pred_region
        // Predicated region
        $region33: #{tpu_custom_call.1} parent=31 // pred_check
          %p242 = pneg %p50
        $region34: #{tpu_custom_call.1} parent=31 // pred_check_branch
          %244 = sbr.rel (%p242) target = $region36
        $region35: #{tpu_custom_call.1} parent=31 // pred_region
          %s245 = sand.u32 %s40, 1
          %s246 = scalar_lea.sflag [#allocation4], %s245
          %s247 = sand.u32 %s40, 1
          %s248 = smul.addr %s247, 256
          %s249 = scalar_lea.vmem [#allocation3], %s248
          %s250 = smul.u32 32, %s25
          %252 = vsyncadd %s246, 0
          %s253 = smul.addr %s250, 8
          %s254 = scalar_lea.hbm %s0, %s253
          %s255 = sshll.u32 %s254, 4
          %s256 = int_to_ptr.hbm [resolvable:$true] %s255
          %s257 = sshll.u32 %s249, 4
          %s258 = int_to_ptr.vmem [resolvable:$true] %s257
          %263 = dma.hbm_to_vmem [thread:$0]  %s256, 4096, %s258, %s246, 128, 128, 8
        $region36: #{tpu_custom_call.1} parent=31 // pred_fallthru
          _
      $region32: #{tpu_custom_call.1} parent=5 // pred_fallthru
        _
      %p264 = scmp.le.s32.totalorder 1, %s18
      %p265 = scmp.lt.s32.totalorder %s18, 3
      %p266 = pnand %p264, %p265
      %p267 = pneg %p266
      // Predicated region
      $region37: #{tpu_custom_call.1} parent=5 // pred_check
        _
      $region38: #{tpu_custom_call.1} parent=5 // pred_check_branch
        %269 = sbr.rel (%p266) target = $region40
      $region39: #{tpu_custom_call.1} parent=5 // pred_region
        %s270 = ssub.s32 %s18, 1
        %s271 = sand.u32 %s43, 1
        %s272 = scalar_lea.sflag [#allocation4], %s271
        %s273 = sand.u32 %s43, 1
        %s274 = smul.addr %s273, 256
        %s275 = scalar_lea.vmem [#allocation3], %s274
        // Predicated region
        $region41: #{tpu_custom_call.1} parent=39 // pred_check
          %p276 = pneg %p56
        $region42: #{tpu_custom_call.1} parent=39 // pred_check_branch
          %278 = sbr.rel (%p276) target = $region44
        $region43: #{tpu_custom_call.1} parent=39 // pred_region
          %280 = dma.done %s272, 4096
        $region44: #{tpu_custom_call.1} parent=39 // pred_fallthru
          _
        // Predicated region
        $region45: #{tpu_custom_call.1} parent=39 // pred_check
          %p281 = pneg %p82
        $region46: #{tpu_custom_call.1} parent=39 // pred_check_branch
          %283 = sbr.rel (%p281) target = $region48
        $region47: #{tpu_custom_call.1} parent=39 // pred_region
          %285 = dma.done [#allocation7], 2048
        $region48: #{tpu_custom_call.1} parent=39 // pred_fallthru
          _
        // Predicated region
        $region49: #{tpu_custom_call.1} parent=39 // pred_check
          %p286 = pneg %p134
        $region50: #{tpu_custom_call.1} parent=39 // pred_check_branch
          %288 = sbr.rel (%p286) target = $region52
        $region51: #{tpu_custom_call.1} parent=39 // pred_region
          %290 = dma.done [#allocation7], 2048
        $region52: #{tpu_custom_call.1} parent=39 // pred_fallthru
          _
        %s291 = sand.u32 %s43, 1
        %s292 = scalar_lea.sflag [#allocation4], %s291
        %s293 = sand.u32 %s43, 1
        %s294 = smul.addr %s293, 256
        %s295 = scalar_lea.vmem [#allocation3], %s294
        %p296 = pneg %p56
        %p297 = pneg %p53
        %p298 = pneg %p82
        %p299 = pneg %p79
        %p300 = scmp.lt.s32.totalorder %s28, 0
        %s301 = scalar_select %p300, %s28, 0
        %s302 = scalar_lea.vmem %s2, %s301
        %p303 = pneg %p108
        %p304 = pneg %p105
        %p305 = pneg %p134
        %p306 = pneg %p131
        %p307 = pneg %p155
        %p308 = pneg %p152
        %p309 = pneg %p181
        %p310 = pneg %p178
        %s311 = sand.u32 %s168, 1
        %s312 = scalar_lea.sflag [#allocation5], %s311
        %s313 = sand.u32 %s168, 1
        %s314 = smul.addr %s313, 256
        %s315 = scalar_lea.vmem [#allocation9], %s314
        %s316 = smul.u32 32, %s27
        %p317 = scmp.lt.s32.totalorder %s28, 0
        %s318 = scalar_select %p317, %s28, 0
        %s319 = scalar_lea.vmem %s2, %s318
        %s320 = smul.u32 16, %s28
        %s321 = smul.u32 32, %s27
        %p322 = scmp.eq.s32.totalorder %s28, 0
        // Predicated region
        $region53: #{tpu_custom_call.1} parent=39 // pred_check
          %p323 = pneg %p322
        $region54: #{tpu_custom_call.1} parent=39 // pred_check_branch
          %325 = sbr.rel (%p323) target = $region56
        $region55: #{tpu_custom_call.1} parent=39 // pred_region
          %326 = vst [vmem:[#allocation2] sm:$0xff] 0.0
          %327 = vst [vmem:[#allocation2 + $0x8] sm:$0xff] 0.0
          %328 = vst [vmem:[#allocation2 + $0x10] sm:$0xff] 0.0
          %329 = vst [vmem:[#allocation2 + $0x18] sm:$0xff] 0.0
          %330 = vst [vmem:[#allocation2 + $0x20] sm:$0xff] 0.0
          %331 = vst [vmem:[#allocation2 + $0x28] sm:$0xff] 0.0
          %332 = vst [vmem:[#allocation2 + $0x30] sm:$0xff] 0.0
          %333 = vst [vmem:[#allocation2 + $0x38] sm:$0xff] 0.0
          %334 = vst [vmem:[#allocation2 + $0x40] sm:$0xff] 0.0
          %335 = vst [vmem:[#allocation2 + $0x48] sm:$0xff] 0.0
          %336 = vst [vmem:[#allocation2 + $0x50] sm:$0xff] 0.0
          %337 = vst [vmem:[#allocation2 + $0x58] sm:$0xff] 0.0
          %338 = vst [vmem:[#allocation2 + $0x60] sm:$0xff] 0.0
          %339 = vst [vmem:[#allocation2 + $0x68] sm:$0xff] 0.0
          %340 = vst [vmem:[#allocation2 + $0x70] sm:$0xff] 0.0
          %341 = vst [vmem:[#allocation2 + $0x78] sm:$0xff] 0.0
          %342 = vst [vmem:[#allocation2 + $0x80] sm:$0xff] 0.0
          %343 = vst [vmem:[#allocation2 + $0x88] sm:$0xff] 0.0
          %344 = vst [vmem:[#allocation2 + $0x90] sm:$0xff] 0.0
          %345 = vst [vmem:[#allocation2 + $0x98] sm:$0xff] 0.0
          %346 = vst [vmem:[#allocation2 + $0xa0] sm:$0xff] 0.0
          %347 = vst [vmem:[#allocation2 + $0xa8] sm:$0xff] 0.0
          %348 = vst [vmem:[#allocation2 + $0xb0] sm:$0xff] 0.0
          %349 = vst [vmem:[#allocation2 + $0xb8] sm:$0xff] 0.0
          %350 = vst [vmem:[#allocation2 + $0xc0] sm:$0xff] 0.0
          %351 = vst [vmem:[#allocation2 + $0xc8] sm:$0xff] 0.0
          %352 = vst [vmem:[#allocation2 + $0xd0] sm:$0xff] 0.0
          %353 = vst [vmem:[#allocation2 + $0xd8] sm:$0xff] 0.0
          %354 = vst [vmem:[#allocation2 + $0xe0] sm:$0xff] 0.0
          %355 = vst [vmem:[#allocation2 + $0xe8] sm:$0xff] 0.0
          %356 = vst [vmem:[#allocation2 + $0xf0] sm:$0xff] 0.0
          %357 = vst [vmem:[#allocation2 + $0xf8] sm:$0xff] 0.0
        $region56: #{tpu_custom_call.1} parent=39 // pred_fallthru
          _
        %v358 = vld [vmem:[%s275] sm:$0xff]
        %v359 = vld [vmem:[%s275 + $0x8] sm:$0xff]
        %v360 = vld [vmem:[%s275 + $0x10] sm:$0xff]
        %v361 = vld [vmem:[%s275 + $0x18] sm:$0xff]
        %v362 = vld [vmem:[%s275 + $0x20] sm:$0xff]
        %v363 = vld [vmem:[%s275 + $0x28] sm:$0xff]
        %v364 = vld [vmem:[%s275 + $0x30] sm:$0xff]
        %v365 = vld [vmem:[%s275 + $0x38] sm:$0xff]
        %v366 = vld [vmem:[%s275 + $0x40] sm:$0xff]
        %v367 = vld [vmem:[%s275 + $0x48] sm:$0xff]
        %v368 = vld [vmem:[%s275 + $0x50] sm:$0xff]
        %v369 = vld [vmem:[%s275 + $0x58] sm:$0xff]
        %v370 = vld [vmem:[%s275 + $0x60] sm:$0xff]
        %v371 = vld [vmem:[%s275 + $0x68] sm:$0xff]
        %v372 = vld [vmem:[%s275 + $0x70] sm:$0xff]
        %v373 = vld [vmem:[%s275 + $0x78] sm:$0xff]
        %v374 = vld [vmem:[%s275 + $0x80] sm:$0xff]
        %v375 = vld [vmem:[%s275 + $0x88] sm:$0xff]
        %v376 = vld [vmem:[%s275 + $0x90] sm:$0xff]
        %v377 = vld [vmem:[%s275 + $0x98] sm:$0xff]
        %v378 = vld [vmem:[%s275 + $0xa0] sm:$0xff]
        %v379 = vld [vmem:[%s275 + $0xa8] sm:$0xff]
        %v380 = vld [vmem:[%s275 + $0xb0] sm:$0xff]
        %v381 = vld [vmem:[%s275 + $0xb8] sm:$0xff]
        %v382 = vld [vmem:[%s275 + $0xc0] sm:$0xff]
        %v383 = vld [vmem:[%s275 + $0xc8] sm:$0xff]
        %v384 = vld [vmem:[%s275 + $0xd0] sm:$0xff]
        %v385 = vld [vmem:[%s275 + $0xd8] sm:$0xff]
        %v386 = vld [vmem:[%s275 + $0xe0] sm:$0xff]
        %v387 = vld [vmem:[%s275 + $0xe8] sm:$0xff]
        %v388 = vld [vmem:[%s275 + $0xf0] sm:$0xff]
        %v389 = vld [vmem:[%s275 + $0xf8] sm:$0xff]
        %v390 = vld [vmem:[#allocation6] sm:$0xff]
        %v391 = vld [vmem:[#allocation6 + $0x8] sm:$0xff]
        %v392 = vld [vmem:[#allocation6 + $0x10] sm:$0xff]
        %v393 = vld [vmem:[#allocation6 + $0x18] sm:$0xff]
        %v394 = vld [vmem:[#allocation6 + $0x20] sm:$0xff]
        %v395 = vld [vmem:[#allocation6 + $0x28] sm:$0xff]
        %v396 = vld [vmem:[#allocation6 + $0x30] sm:$0xff]
        %v397 = vld [vmem:[#allocation6 + $0x38] sm:$0xff]
        %v398 = vld [vmem:[#allocation6 + $0x40] sm:$0xff]
        %v399 = vld [vmem:[#allocation6 + $0x48] sm:$0xff]
        %v400 = vld [vmem:[#allocation6 + $0x50] sm:$0xff]
        %v401 = vld [vmem:[#allocation6 + $0x58] sm:$0xff]
        %v402 = vld [vmem:[#allocation6 + $0x60] sm:$0xff]
        %v403 = vld [vmem:[#allocation6 + $0x68] sm:$0xff]
        %v404 = vld [vmem:[#allocation6 + $0x70] sm:$0xff]
        %v405 = vld [vmem:[#allocation6 + $0x78] sm:$0xff]
        %v406 = vld [vmem:[%s319] sm:$0x1]
        %v408 = vperm.slane %v406, 0
        %410 = vmatpush.msra.mxu0 %v405
        %411 = vmatpush.msra.mxu0 %v404
        %412 = vmatpush.msra.mxu0 %v403
        %413 = vmatpush.msra.mxu0 %v402
        %414 = vmatpush.msra.mxu0 %v401
        %415 = vmatpush.msra.mxu0 %v400
        %416 = vmatpush.msra.mxu0 %v399
        %417 = vmatpush.msra.mxu0 %v398
        %418 = vmatpush.msra.mxu0 %v397
        %419 = vmatpush.msra.mxu0 %v396
        %420 = vmatpush.msra.mxu0 %v395
        %421 = vmatpush.msra.mxu0 %v394
        %422 = vmatpush.msra.mxu0 %v393
        %423 = vmatpush.msra.mxu0 %v392
        %424 = vmatpush.msra.mxu0 %v391
        %425 = vmatpush.msra.mxu0 %v390
        %426 = vmatmul.f32.gmra.mxu0 %v358
        %v427 = vpop.f32.mrf.mxu0
        %v428 = vadd.f32 %v408, %v427
        %429 = vmatmul.f32.gmra.mxu0 %v359
        %v430 = vpop.f32.mrf.mxu0
        %v431 = vadd.f32 %v408, %v430
        %432 = vmatmul.f32.gmra.mxu0 %v360
        %v433 = vpop.f32.mrf.mxu0
        %v434 = vadd.f32 %v408, %v433
        %435 = vmatmul.f32.gmra.mxu0 %v361
        %v436 = vpop.f32.mrf.mxu0
        %v437 = vadd.f32 %v408, %v436
        %438 = vmatmul.f32.gmra.mxu0 %v362
        %v439 = vpop.f32.mrf.mxu0
        %v440 = vadd.f32 %v408, %v439
        %441 = vmatmul.f32.gmra.mxu0 %v363
        %v442 = vpop.f32.mrf.mxu0
        %v443 = vadd.f32 %v408, %v442
        %444 = vmatmul.f32.gmra.mxu0 %v364
        %v445 = vpop.f32.mrf.mxu0
        %v446 = vadd.f32 %v408, %v445
        %447 = vmatmul.f32.gmra.mxu0 %v365
        %v448 = vpop.f32.mrf.mxu0
        %v449 = vadd.f32 %v408, %v448
        %450 = vmatmul.f32.gmra.mxu0 %v366
        %v451 = vpop.f32.mrf.mxu0
        %v452 = vadd.f32 %v408, %v451
        %453 = vmatmul.f32.gmra.mxu0 %v367
        %v454 = vpop.f32.mrf.mxu0
        %v455 = vadd.f32 %v408, %v454
        %456 = vmatmul.f32.gmra.mxu0 %v368
        %v457 = vpop.f32.mrf.mxu0
        %v458 = vadd.f32 %v408, %v457
        %459 = vmatmul.f32.gmra.mxu0 %v369
        %v460 = vpop.f32.mrf.mxu0
        %v461 = vadd.f32 %v408, %v460
        %462 = vmatmul.f32.gmra.mxu0 %v370
        %v463 = vpop.f32.mrf.mxu0
        %v464 = vadd.f32 %v408, %v463
        %465 = vmatmul.f32.gmra.mxu0 %v371
        %v466 = vpop.f32.mrf.mxu0
        %v467 = vadd.f32 %v408, %v466
        %468 = vmatmul.f32.gmra.mxu0 %v372
        %v469 = vpop.f32.mrf.mxu0
        %v470 = vadd.f32 %v408, %v469
        %471 = vmatmul.f32.gmra.mxu0 %v373
        %v472 = vpop.f32.mrf.mxu0
        %v473 = vadd.f32 %v408, %v472
        %474 = vmatmul.f32.gmra.mxu0 %v374
        %v475 = vpop.f32.mrf.mxu0
        %v476 = vadd.f32 %v408, %v475
        %477 = vmatmul.f32.gmra.mxu0 %v375
        %v478 = vpop.f32.mrf.mxu0
        %v479 = vadd.f32 %v408, %v478
        %480 = vmatmul.f32.gmra.mxu0 %v376
        %v481 = vpop.f32.mrf.mxu0
        %v482 = vadd.f32 %v408, %v481
        %483 = vmatmul.f32.gmra.mxu0 %v377
        %v484 = vpop.f32.mrf.mxu0
        %v485 = vadd.f32 %v408, %v484
        %486 = vmatmul.f32.gmra.mxu0 %v378
        %v487 = vpop.f32.mrf.mxu0
        %v488 = vadd.f32 %v408, %v487
        %489 = vmatmul.f32.gmra.mxu0 %v379
        %v490 = vpop.f32.mrf.mxu0
        %v491 = vadd.f32 %v408, %v490
        %492 = vmatmul.f32.gmra.mxu0 %v380
        %v493 = vpop.f32.mrf.mxu0
        %v494 = vadd.f32 %v408, %v493
        %495 = vmatmul.f32.gmra.mxu0 %v381
        %v496 = vpop.f32.mrf.mxu0
        %v497 = vadd.f32 %v408, %v496
        %498 = vmatmul.f32.gmra.mxu0 %v382
        %v499 = vpop.f32.mrf.mxu0
        %v500 = vadd.f32 %v408, %v499
        %501 = vmatmul.f32.gmra.mxu0 %v383
        %v502 = vpop.f32.mrf.mxu0
        %v503 = vadd.f32 %v408, %v502
        %504 = vmatmul.f32.gmra.mxu0 %v384
        %v505 = vpop.f32.mrf.mxu0
        %v506 = vadd.f32 %v408, %v505
        %507 = vmatmul.f32.gmra.mxu0 %v385
        %v508 = vpop.f32.mrf.mxu0
        %v509 = vadd.f32 %v408, %v508
        %510 = vmatmul.f32.gmra.mxu0 %v386
        %v511 = vpop.f32.mrf.mxu0
        %v512 = vadd.f32 %v408, %v511
        %513 = vmatmul.f32.gmra.mxu0 %v387
        %v514 = vpop.f32.mrf.mxu0
        %v515 = vadd.f32 %v408, %v514
        %516 = vmatmul.f32.gmra.mxu0 %v388
        %v517 = vpop.f32.mrf.mxu0
        %v518 = vadd.f32 %v408, %v517
        %519 = vmatmul.f32.gmra.mxu0 %v389
        %v520 = vpop.f32.mrf.mxu0
        %v521 = vadd.f32 %v408, %v520
        %522 = vdwg.mxu0
        %v523 = vmul.f32 %v428, 0.5
        %v524 = vmul.f32 %v431, 0.5
        %v525 = vmul.f32 %v434, 0.5
        %v526 = vmul.f32 %v437, 0.5
        %v527 = vmul.f32 %v440, 0.5
        %v528 = vmul.f32 %v443, 0.5
        %v529 = vmul.f32 %v446, 0.5
        %v530 = vmul.f32 %v449, 0.5
        %v531 = vmul.f32 %v452, 0.5
        %v532 = vmul.f32 %v455, 0.5
        %v533 = vmul.f32 %v458, 0.5
        %v534 = vmul.f32 %v461, 0.5
        %v535 = vmul.f32 %v464, 0.5
        %v536 = vmul.f32 %v467, 0.5
        %v537 = vmul.f32 %v470, 0.5
        %v538 = vmul.f32 %v473, 0.5
        %v539 = vmul.f32 %v476, 0.5
        %v540 = vmul.f32 %v479, 0.5
        %v541 = vmul.f32 %v482, 0.5
        %v542 = vmul.f32 %v485, 0.5
        %v543 = vmul.f32 %v488, 0.5
        %v544 = vmul.f32 %v491, 0.5
        %v545 = vmul.f32 %v494, 0.5
        %v546 = vmul.f32 %v497, 0.5
        %v547 = vmul.f32 %v500, 0.5
        %v548 = vmul.f32 %v503, 0.5
        %v549 = vmul.f32 %v506, 0.5
        %v550 = vmul.f32 %v509, 0.5
        %v551 = vmul.f32 %v512, 0.5
        %v552 = vmul.f32 %v515, 0.5
        %v553 = vmul.f32 %v518, 0.5
        %v554 = vmul.f32 %v521, 0.5
        %v555 = vmul.f32 %v428, 0.70710677
        %v556 = vmul.f32 %v431, 0.70710677
        %v557 = vmul.f32 %v434, 0.70710677
        %v558 = vmul.f32 %v437, 0.70710677
        %v559 = vmul.f32 %v440, 0.70710677
        %v560 = vmul.f32 %v443, 0.70710677
        %v561 = vmul.f32 %v446, 0.70710677
        %v562 = vmul.f32 %v449, 0.70710677
        %v563 = vmul.f32 %v452, 0.70710677
        %v564 = vmul.f32 %v455, 0.70710677
        %v565 = vmul.f32 %v458, 0.70710677
        %v566 = vmul.f32 %v461, 0.70710677
        %v567 = vmul.f32 %v464, 0.70710677
        %v568 = vmul.f32 %v467, 0.70710677
        %v569 = vmul.f32 %v470, 0.70710677
        %v570 = vmul.f32 %v473, 0.70710677
        %v571 = vmul.f32 %v476, 0.70710677
        %v572 = vmul.f32 %v479, 0.70710677
        %v573 = vmul.f32 %v482, 0.70710677
        %v574 = vmul.f32 %v485, 0.70710677
        %v575 = vmul.f32 %v488, 0.70710677
        %v576 = vmul.f32 %v491, 0.70710677
        %v577 = vmul.f32 %v494, 0.70710677
        %v578 = vmul.f32 %v497, 0.70710677
        %v579 = vmul.f32 %v500, 0.70710677
        %v580 = vmul.f32 %v503, 0.70710677
        %v581 = vmul.f32 %v506, 0.70710677
        %v582 = vmul.f32 %v509, 0.70710677
        %v583 = vmul.f32 %v512, 0.70710677
        %v584 = vmul.f32 %v515, 0.70710677
        %v585 = vmul.f32 %v518, 0.70710677
        %v586 = vmul.f32 %v521, 0.70710677
        %v587 = vmul.f32 %v555, %v555
        %v588 = vmin.f32 16.0, %v587
        %v589 = vmul.f32 %v588, 2.1237322e-06
        %v590 = vadd.f32 %v589, 0.00028619796
        %v591 = vmul.f32 %v588, %v590
        %v592 = vadd.f32 %v591, 0.0036580483
        %v593 = vmul.f32 %v588, %v592
        %v594 = vadd.f32 %v593, 0.05243302
        %v595 = vmul.f32 %v588, %v594
        %v596 = vadd.f32 %v595, 0.18741608
        %v597 = vmul.f32 %v588, %v596
        %v598 = vadd.f32 %v597, 1.1283791
        %v599 = vmul.f32 %v555, %v598
        %v600 = vmul.f32 %v588, 3.8918573e-05
        %v601 = vadd.f32 %v600, 0.001143296
        %v602 = vmul.f32 %v588, %v601
        %v603 = vadd.f32 %v602, 0.014752088
        %v604 = vmul.f32 %v588, %v603
        %v605 = vadd.f32 %v604, 0.112945676
        %v606 = vmul.f32 %v588, %v605
        %v607 = vadd.f32 %v606, 0.4994258
        %v608 = vmul.f32 %v588, %v607
        %v609 = vadd.f32 %v608, 1.0
        %v610 = vrcp.pop %v609
        %v611 = vmul.f32 %v609, %v610
        %v612 = vsub.f32 1.0, %v611
        %v613 = vmul.f32 %v610, %v612
        %v614 = vadd.f32 %v610, %v613
        %vm615 = vweird.f32 %v609
        %vm616 = vweird.f32 %v610
        %vm617 = vmor %vm615, %vm616
        %v618 = vsel %vm617, %v610, %v614
        %v619 = vand.u32 2147483647, %v609
        %vm620 = vcmp.eq.f32.partialorder %v619, 8.507059e+37
        %v621 = vand.u32 %v609, 2147483648
        %v622 = vor.u32 1.1754944e-38, %v621
        %v623 = vsel %vm620, %v622, %v618
        %v624 = vmul.f32 %v599, %v623
        %v625 = vmin.f32 %v624, 1.0
        %v626 = vmax.f32 %v625, -1.0
        %v627 = vmul.f32 %v556, %v556
        %v628 = vmin.f32 16.0, %v627
        %v629 = vmul.f32 %v628, 2.1237322e-06
        %v630 = vadd.f32 %v629, 0.00028619796
        %v631 = vmul.f32 %v628, %v630
        %v632 = vadd.f32 %v631, 0.0036580483
        %v633 = vmul.f32 %v628, %v632
        %v634 = vadd.f32 %v633, 0.05243302
        %v635 = vmul.f32 %v628, %v634
        %v636 = vadd.f32 %v635, 0.18741608
        %v637 = vmul.f32 %v628, %v636
        %v638 = vadd.f32 %v637, 1.1283791
        %v639 = vmul.f32 %v556, %v638
        %v640 = vmul.f32 %v628, 3.8918573e-05
        %v641 = vadd.f32 %v640, 0.001143296
        %v642 = vmul.f32 %v628, %v641
        %v643 = vadd.f32 %v642, 0.014752088
        %v644 = vmul.f32 %v628, %v643
        %v645 = vadd.f32 %v644, 0.112945676
        %v646 = vmul.f32 %v628, %v645
        %v647 = vadd.f32 %v646, 0.4994258
        %v648 = vmul.f32 %v628, %v647
        %v649 = vadd.f32 %v648, 1.0
        %v650 = vrcp.pop %v649
        %v651 = vmul.f32 %v649, %v650
        %v652 = vsub.f32 1.0, %v651
        %v653 = vmul.f32 %v650, %v652
        %v654 = vadd.f32 %v650, %v653
        %vm655 = vweird.f32 %v649
        %vm656 = vweird.f32 %v650
        %vm657 = vmor %vm655, %vm656
        %v658 = vsel %vm657, %v650, %v654
        %v659 = vand.u32 2147483647, %v649
        %vm660 = vcmp.eq.f32.partialorder %v659, 8.507059e+37
        %v661 = vand.u32 %v649, 2147483648
        %v662 = vor.u32 1.1754944e-38, %v661
        %v663 = vsel %vm660, %v662, %v658
        %v664 = vmul.f32 %v639, %v663
        %v665 = vmin.f32 %v664, 1.0
        %v666 = vmax.f32 %v665, -1.0
        %v667 = vmul.f32 %v557, %v557
        %v668 = vmin.f32 16.0, %v667
        %v669 = vmul.f32 %v668, 2.1237322e-06
        %v670 = vadd.f32 %v669, 0.00028619796
        %v671 = vmul.f32 %v668, %v670
        %v672 = vadd.f32 %v671, 0.0036580483
        %v673 = vmul.f32 %v668, %v672
        %v674 = vadd.f32 %v673, 0.05243302
        %v675 = vmul.f32 %v668, %v674
        %v676 = vadd.f32 %v675, 0.18741608
        %v677 = vmul.f32 %v668, %v676
        %v678 = vadd.f32 %v677, 1.1283791
        %v679 = vmul.f32 %v557, %v678
        %v680 = vmul.f32 %v668, 3.8918573e-05
        %v681 = vadd.f32 %v680, 0.001143296
        %v682 = vmul.f32 %v668, %v681
        %v683 = vadd.f32 %v682, 0.014752088
        %v684 = vmul.f32 %v668, %v683
        %v685 = vadd.f32 %v684, 0.112945676
        %v686 = vmul.f32 %v668, %v685
        %v687 = vadd.f32 %v686, 0.4994258
        %v688 = vmul.f32 %v668, %v687
        %v689 = vadd.f32 %v688, 1.0
        %v690 = vrcp.pop %v689
        %v691 = vmul.f32 %v689, %v690
        %v692 = vsub.f32 1.0, %v691
        %v693 = vmul.f32 %v690, %v692
        %v694 = vadd.f32 %v690, %v693
        %vm695 = vweird.f32 %v689
        %vm696 = vweird.f32 %v690
        %vm697 = vmor %vm695, %vm696
        %v698 = vsel %vm697, %v690, %v694
        %v699 = vand.u32 2147483647, %v689
        %vm700 = vcmp.eq.f32.partialorder %v699, 8.507059e+37
        %v701 = vand.u32 %v689, 2147483648
        %v702 = vor.u32 1.1754944e-38, %v701
        %v703 = vsel %vm700, %v702, %v698
        %v704 = vmul.f32 %v679, %v703
        %v705 = vmin.f32 %v704, 1.0
        %v706 = vmax.f32 %v705, -1.0
        %v707 = vmul.f32 %v558, %v558
        %v708 = vmin.f32 16.0, %v707
        %v709 = vmul.f32 %v708, 2.1237322e-06
        %v710 = vadd.f32 %v709, 0.00028619796
        %v711 = vmul.f32 %v708, %v710
        %v712 = vadd.f32 %v711, 0.0036580483
        %v713 = vmul.f32 %v708, %v712
        %v714 = vadd.f32 %v713, 0.05243302
        %v715 = vmul.f32 %v708, %v714
        %v716 = vadd.f32 %v715, 0.18741608
        %v717 = vmul.f32 %v708, %v716
        %v718 = vadd.f32 %v717, 1.1283791
        %v719 = vmul.f32 %v558, %v718
        %v720 = vmul.f32 %v708, 3.8918573e-05
        %v721 = vadd.f32 %v720, 0.001143296
        %v722 = vmul.f32 %v708, %v721
        %v723 = vadd.f32 %v722, 0.014752088
        %v724 = vmul.f32 %v708, %v723
        %v725 = vadd.f32 %v724, 0.112945676
        %v726 = vmul.f32 %v708, %v725
        %v727 = vadd.f32 %v726, 0.4994258
        %v728 = vmul.f32 %v708, %v727
        %v729 = vadd.f32 %v728, 1.0
        %v730 = vrcp.pop %v729
        %v731 = vmul.f32 %v729, %v730
        %v732 = vsub.f32 1.0, %v731
        %v733 = vmul.f32 %v730, %v732
        %v734 = vadd.f32 %v730, %v733
        %vm735 = vweird.f32 %v729
        %vm736 = vweird.f32 %v730
        %vm737 = vmor %vm735, %vm736
        %v738 = vsel %vm737, %v730, %v734
        %v739 = vand.u32 2147483647, %v729
        %vm740 = vcmp.eq.f32.partialorder %v739, 8.507059e+37
        %v741 = vand.u32 %v729, 2147483648
        %v742 = vor.u32 1.1754944e-38, %v741
        %v743 = vsel %vm740, %v742, %v738
        %v744 = vmul.f32 %v719, %v743
        %v745 = vmin.f32 %v744, 1.0
        %v746 = vmax.f32 %v745, -1.0
        %v747 = vmul.f32 %v559, %v559
        %v748 = vmin.f32 16.0, %v747
        %v749 = vmul.f32 %v748, 2.1237322e-06
        %v750 = vadd.f32 %v749, 0.00028619796
        %v751 = vmul.f32 %v748, %v750
        %v752 = vadd.f32 %v751, 0.0036580483
        %v753 = vmul.f32 %v748, %v752
        %v754 = vadd.f32 %v753, 0.05243302
        %v755 = vmul.f32 %v748, %v754
        %v756 = vadd.f32 %v755, 0.18741608
        %v757 = vmul.f32 %v748, %v756
        %v758 = vadd.f32 %v757, 1.1283791
        %v759 = vmul.f32 %v559, %v758
        %v760 = vmul.f32 %v748, 3.8918573e-05
        %v761 = vadd.f32 %v760, 0.001143296
        %v762 = vmul.f32 %v748, %v761
        %v763 = vadd.f32 %v762, 0.014752088
        %v764 = vmul.f32 %v748, %v763
        %v765 = vadd.f32 %v764, 0.112945676
        %v766 = vmul.f32 %v748, %v765
        %v767 = vadd.f32 %v766, 0.4994258
        %v768 = vmul.f32 %v748, %v767
        %v769 = vadd.f32 %v768, 1.0
        %v770 = vrcp.pop %v769
        %v771 = vmul.f32 %v769, %v770
        %v772 = vsub.f32 1.0, %v771
        %v773 = vmul.f32 %v770, %v772
        %v774 = vadd.f32 %v770, %v773
        %vm775 = vweird.f32 %v769
        %vm776 = vweird.f32 %v770
        %vm777 = vmor %vm775, %vm776
        %v778 = vsel %vm777, %v770, %v774
        %v779 = vand.u32 2147483647, %v769
        %vm780 = vcmp.eq.f32.partialorder %v779, 8.507059e+37
        %v781 = vand.u32 %v769, 2147483648
        %v782 = vor.u32 1.1754944e-38, %v781
        %v783 = vsel %vm780, %v782, %v778
        %v784 = vmul.f32 %v759, %v783
        %v785 = vmin.f32 %v784, 1.0
        %v786 = vmax.f32 %v785, -1.0
        %v787 = vmul.f32 %v560, %v560
        %v788 = vmin.f32 16.0, %v787
        %v789 = vmul.f32 %v788, 2.1237322e-06
        %v790 = vadd.f32 %v789, 0.00028619796
        %v791 = vmul.f32 %v788, %v790
        %v792 = vadd.f32 %v791, 0.0036580483
        %v793 = vmul.f32 %v788, %v792
        %v794 = vadd.f32 %v793, 0.05243302
        %v795 = vmul.f32 %v788, %v794
        %v796 = vadd.f32 %v795, 0.18741608
        %v797 = vmul.f32 %v788, %v796
        %v798 = vadd.f32 %v797, 1.1283791
        %v799 = vmul.f32 %v560, %v798
        %v800 = vmul.f32 %v788, 3.8918573e-05
        %v801 = vadd.f32 %v800, 0.001143296
        %v802 = vmul.f32 %v788, %v801
        %v803 = vadd.f32 %v802, 0.014752088
        %v804 = vmul.f32 %v788, %v803
        %v805 = vadd.f32 %v804, 0.112945676
        %v806 = vmul.f32 %v788, %v805
        %v807 = vadd.f32 %v806, 0.4994258
        %v808 = vmul.f32 %v788, %v807
        %v809 = vadd.f32 %v808, 1.0
        %v810 = vrcp.pop %v809
        %v811 = vmul.f32 %v809, %v810
        %v812 = vsub.f32 1.0, %v811
        %v813 = vmul.f32 %v810, %v812
        %v814 = vadd.f32 %v810, %v813
        %vm815 = vweird.f32 %v809
        %vm816 = vweird.f32 %v810
        %vm817 = vmor %vm815, %vm816
        %v818 = vsel %vm817, %v810, %v814
        %v819 = vand.u32 2147483647, %v809
        %vm820 = vcmp.eq.f32.partialorder %v819, 8.507059e+37
        %v821 = vand.u32 %v809, 2147483648
        %v822 = vor.u32 1.1754944e-38, %v821
        %v823 = vsel %vm820, %v822, %v818
        %v824 = vmul.f32 %v799, %v823
        %v825 = vmin.f32 %v824, 1.0
        %v826 = vmax.f32 %v825, -1.0
        %v827 = vmul.f32 %v561, %v561
        %v828 = vmin.f32 16.0, %v827
        %v829 = vmul.f32 %v828, 2.1237322e-06
        %v830 = vadd.f32 %v829, 0.00028619796
        %v831 = vmul.f32 %v828, %v830
        %v832 = vadd.f32 %v831, 0.0036580483
        %v833 = vmul.f32 %v828, %v832
        %v834 = vadd.f32 %v833, 0.05243302
        %v835 = vmul.f32 %v828, %v834
        %v836 = vadd.f32 %v835, 0.18741608
        %v837 = vmul.f32 %v828, %v836
        %v838 = vadd.f32 %v837, 1.1283791
        %v839 = vmul.f32 %v561, %v838
        %v840 = vmul.f32 %v828, 3.8918573e-05
        %v841 = vadd.f32 %v840, 0.001143296
        %v842 = vmul.f32 %v828, %v841
        %v843 = vadd.f32 %v842, 0.014752088
        %v844 = vmul.f32 %v828, %v843
        %v845 = vadd.f32 %v844, 0.112945676
        %v846 = vmul.f32 %v828, %v845
        %v847 = vadd.f32 %v846, 0.4994258
        %v848 = vmul.f32 %v828, %v847
        %v849 = vadd.f32 %v848, 1.0
        %v850 = vrcp.pop %v849
        %v851 = vmul.f32 %v849, %v850
        %v852 = vsub.f32 1.0, %v851
        %v853 = vmul.f32 %v850, %v852
        %v854 = vadd.f32 %v850, %v853
        %vm855 = vweird.f32 %v849
        %vm856 = vweird.f32 %v850
        %vm857 = vmor %vm855, %vm856
        %v858 = vsel %vm857, %v850, %v854
        %v859 = vand.u32 2147483647, %v849
        %vm860 = vcmp.eq.f32.partialorder %v859, 8.507059e+37
        %v861 = vand.u32 %v849, 2147483648
        %v862 = vor.u32 1.1754944e-38, %v861
        %v863 = vsel %vm860, %v862, %v858
        %v864 = vmul.f32 %v839, %v863
        %v865 = vmin.f32 %v864, 1.0
        %v866 = vmax.f32 %v865, -1.0
        %v867 = vmul.f32 %v562, %v562
        %v868 = vmin.f32 16.0, %v867
        %v869 = vmul.f32 %v868, 2.1237322e-06
        %v870 = vadd.f32 %v869, 0.00028619796
        %v871 = vmul.f32 %v868, %v870
        %v872 = vadd.f32 %v871, 0.0036580483
        %v873 = vmul.f32 %v868, %v872
        %v874 = vadd.f32 %v873, 0.05243302
        %v875 = vmul.f32 %v868, %v874
        %v876 = vadd.f32 %v875, 0.18741608
        %v877 = vmul.f32 %v868, %v876
        %v878 = vadd.f32 %v877, 1.1283791
        %v879 = vmul.f32 %v562, %v878
        %v880 = vmul.f32 %v868, 3.8918573e-05
        %v881 = vadd.f32 %v880, 0.001143296
        %v882 = vmul.f32 %v868, %v881
        %v883 = vadd.f32 %v882, 0.014752088
        %v884 = vmul.f32 %v868, %v883
        %v885 = vadd.f32 %v884, 0.112945676
        %v886 = vmul.f32 %v868, %v885
        %v887 = vadd.f32 %v886, 0.4994258
        %v888 = vmul.f32 %v868, %v887
        %v889 = vadd.f32 %v888, 1.0
        %v890 = vrcp.pop %v889
        %v891 = vmul.f32 %v889, %v890
        %v892 = vsub.f32 1.0, %v891
        %v893 = vmul.f32 %v890, %v892
        %v894 = vadd.f32 %v890, %v893
        %vm895 = vweird.f32 %v889
        %vm896 = vweird.f32 %v890
        %vm897 = vmor %vm895, %vm896
        %v898 = vsel %vm897, %v890, %v894
        %v899 = vand.u32 2147483647, %v889
        %vm900 = vcmp.eq.f32.partialorder %v899, 8.507059e+37
        %v901 = vand.u32 %v889, 2147483648
        %v902 = vor.u32 1.1754944e-38, %v901
        %v903 = vsel %vm900, %v902, %v898
        %v904 = vmul.f32 %v879, %v903
        %v905 = vmin.f32 %v904, 1.0
        %v906 = vmax.f32 %v905, -1.0
        %v907 = vmul.f32 %v563, %v563
        %v908 = vmin.f32 16.0, %v907
        %v909 = vmul.f32 %v908, 2.1237322e-06
        %v910 = vadd.f32 %v909, 0.00028619796
        %v911 = vmul.f32 %v908, %v910
        %v912 = vadd.f32 %v911, 0.0036580483
        %v913 = vmul.f32 %v908, %v912
        %v914 = vadd.f32 %v913, 0.05243302
        %v915 = vmul.f32 %v908, %v914
        %v916 = vadd.f32 %v915, 0.18741608
        %v917 = vmul.f32 %v908, %v916
        %v918 = vadd.f32 %v917, 1.1283791
        %v919 = vmul.f32 %v563, %v918
        %v920 = vmul.f32 %v908, 3.8918573e-05
        %v921 = vadd.f32 %v920, 0.001143296
        %v922 = vmul.f32 %v908, %v921
        %v923 = vadd.f32 %v922, 0.014752088
        %v924 = vmul.f32 %v908, %v923
        %v925 = vadd.f32 %v924, 0.112945676
        %v926 = vmul.f32 %v908, %v925
        %v927 = vadd.f32 %v926, 0.4994258
        %v928 = vmul.f32 %v908, %v927
        %v929 = vadd.f32 %v928, 1.0
        %v930 = vrcp.pop %v929
        %v931 = vmul.f32 %v929, %v930
        %v932 = vsub.f32 1.0, %v931
        %v933 = vmul.f32 %v930, %v932
        %v934 = vadd.f32 %v930, %v933
        %vm935 = vweird.f32 %v929
        %vm936 = vweird.f32 %v930
        %vm937 = vmor %vm935, %vm936
        %v938 = vsel %vm937, %v930, %v934
        %v939 = vand.u32 2147483647, %v929
        %vm940 = vcmp.eq.f32.partialorder %v939, 8.507059e+37
        %v941 = vand.u32 %v929, 2147483648
        %v942 = vor.u32 1.1754944e-38, %v941
        %v943 = vsel %vm940, %v942, %v938
        %v944 = vmul.f32 %v919, %v943
        %v945 = vmin.f32 %v944, 1.0
        %v946 = vmax.f32 %v945, -1.0
        %v947 = vmul.f32 %v564, %v564
        %v948 = vmin.f32 16.0, %v947
        %v949 = vmul.f32 %v948, 2.1237322e-06
        %v950 = vadd.f32 %v949, 0.00028619796
        %v951 = vmul.f32 %v948, %v950
        %v952 = vadd.f32 %v951, 0.0036580483
        %v953 = vmul.f32 %v948, %v952
        %v954 = vadd.f32 %v953, 0.05243302
        %v955 = vmul.f32 %v948, %v954
        %v956 = vadd.f32 %v955, 0.18741608
        %v957 = vmul.f32 %v948, %v956
        %v958 = vadd.f32 %v957, 1.1283791
        %v959 = vmul.f32 %v564, %v958
        %v960 = vmul.f32 %v948, 3.8918573e-05
        %v961 = vadd.f32 %v960, 0.001143296
        %v962 = vmul.f32 %v948, %v961
        %v963 = vadd.f32 %v962, 0.014752088
        %v964 = vmul.f32 %v948, %v963
        %v965 = vadd.f32 %v964, 0.112945676
        %v966 = vmul.f32 %v948, %v965
        %v967 = vadd.f32 %v966, 0.4994258
        %v968 = vmul.f32 %v948, %v967
        %v969 = vadd.f32 %v968, 1.0
        %v970 = vrcp.pop %v969
        %v971 = vmul.f32 %v969, %v970
        %v972 = vsub.f32 1.0, %v971
        %v973 = vmul.f32 %v970, %v972
        %v974 = vadd.f32 %v970, %v973
        %vm975 = vweird.f32 %v969
        %vm976 = vweird.f32 %v970
        %vm977 = vmor %vm975, %vm976
        %v978 = vsel %vm977, %v970, %v974
        %v979 = vand.u32 2147483647, %v969
        %vm980 = vcmp.eq.f32.partialorder %v979, 8.507059e+37
        %v981 = vand.u32 %v969, 2147483648
        %v982 = vor.u32 1.1754944e-38, %v981
        %v983 = vsel %vm980, %v982, %v978
        %v984 = vmul.f32 %v959, %v983
        %v985 = vmin.f32 %v984, 1.0
        %v986 = vmax.f32 %v985, -1.0
        %v987 = vmul.f32 %v565, %v565
        %v988 = vmin.f32 16.0, %v987
        %v989 = vmul.f32 %v988, 2.1237322e-06
        %v990 = vadd.f32 %v989, 0.00028619796
        %v991 = vmul.f32 %v988, %v990
        %v992 = vadd.f32 %v991, 0.0036580483
        %v993 = vmul.f32 %v988, %v992
        %v994 = vadd.f32 %v993, 0.05243302
        %v995 = vmul.f32 %v988, %v994
        %v996 = vadd.f32 %v995, 0.18741608
        %v997 = vmul.f32 %v988, %v996
        %v998 = vadd.f32 %v997, 1.1283791
        %v999 = vmul.f32 %v565, %v998
        %v1000 = vmul.f32 %v988, 3.8918573e-05
        %v1001 = vadd.f32 %v1000, 0.001143296
        %v1002 = vmul.f32 %v988, %v1001
        %v1003 = vadd.f32 %v1002, 0.014752088
        %v1004 = vmul.f32 %v988, %v1003
        %v1005 = vadd.f32 %v1004, 0.112945676
        %v1006 = vmul.f32 %v988, %v1005
        %v1007 = vadd.f32 %v1006, 0.4994258
        %v1008 = vmul.f32 %v988, %v1007
        %v1009 = vadd.f32 %v1008, 1.0
        %v1010 = vrcp.pop %v1009
        %v1011 = vmul.f32 %v1009, %v1010
        %v1012 = vsub.f32 1.0, %v1011
        %v1013 = vmul.f32 %v1010, %v1012
        %v1014 = vadd.f32 %v1010, %v1013
        %vm1015 = vweird.f32 %v1009
        %vm1016 = vweird.f32 %v1010
        %vm1017 = vmor %vm1015, %vm1016
        %v1018 = vsel %vm1017, %v1010, %v1014
        %v1019 = vand.u32 2147483647, %v1009
        %vm1020 = vcmp.eq.f32.partialorder %v1019, 8.507059e+37
        %v1021 = vand.u32 %v1009, 2147483648
        %v1022 = vor.u32 1.1754944e-38, %v1021
        %v1023 = vsel %vm1020, %v1022, %v1018
        %v1024 = vmul.f32 %v999, %v1023
        %v1025 = vmin.f32 %v1024, 1.0
        %v1026 = vmax.f32 %v1025, -1.0
        %v1027 = vmul.f32 %v566, %v566
        %v1028 = vmin.f32 16.0, %v1027
        %v1029 = vmul.f32 %v1028, 2.1237322e-06
        %v1030 = vadd.f32 %v1029, 0.00028619796
        %v1031 = vmul.f32 %v1028, %v1030
        %v1032 = vadd.f32 %v1031, 0.0036580483
        %v1033 = vmul.f32 %v1028, %v1032
        %v1034 = vadd.f32 %v1033, 0.05243302
        %v1035 = vmul.f32 %v1028, %v1034
        %v1036 = vadd.f32 %v1035, 0.18741608
        %v1037 = vmul.f32 %v1028, %v1036
        %v1038 = vadd.f32 %v1037, 1.1283791
        %v1039 = vmul.f32 %v566, %v1038
        %v1040 = vmul.f32 %v1028, 3.8918573e-05
        %v1041 = vadd.f32 %v1040, 0.001143296
        %v1042 = vmul.f32 %v1028, %v1041
        %v1043 = vadd.f32 %v1042, 0.014752088
        %v1044 = vmul.f32 %v1028, %v1043
        %v1045 = vadd.f32 %v1044, 0.112945676
        %v1046 = vmul.f32 %v1028, %v1045
        %v1047 = vadd.f32 %v1046, 0.4994258
        %v1048 = vmul.f32 %v1028, %v1047
        %v1049 = vadd.f32 %v1048, 1.0
        %v1050 = vrcp.pop %v1049
        %v1051 = vmul.f32 %v1049, %v1050
        %v1052 = vsub.f32 1.0, %v1051
        %v1053 = vmul.f32 %v1050, %v1052
        %v1054 = vadd.f32 %v1050, %v1053
        %vm1055 = vweird.f32 %v1049
        %vm1056 = vweird.f32 %v1050
        %vm1057 = vmor %vm1055, %vm1056
        %v1058 = vsel %vm1057, %v1050, %v1054
        %v1059 = vand.u32 2147483647, %v1049
        %vm1060 = vcmp.eq.f32.partialorder %v1059, 8.507059e+37
        %v1061 = vand.u32 %v1049, 2147483648
        %v1062 = vor.u32 1.1754944e-38, %v1061
        %v1063 = vsel %vm1060, %v1062, %v1058
        %v1064 = vmul.f32 %v1039, %v1063
        %v1065 = vmin.f32 %v1064, 1.0
        %v1066 = vmax.f32 %v1065, -1.0
        %v1067 = vmul.f32 %v567, %v567
        %v1068 = vmin.f32 16.0, %v1067
        %v1069 = vmul.f32 %v1068, 2.1237322e-06
        %v1070 = vadd.f32 %v1069, 0.00028619796
        %v1071 = vmul.f32 %v1068, %v1070
        %v1072 = vadd.f32 %v1071, 0.0036580483
        %v1073 = vmul.f32 %v1068, %v1072
        %v1074 = vadd.f32 %v1073, 0.05243302
        %v1075 = vmul.f32 %v1068, %v1074
        %v1076 = vadd.f32 %v1075, 0.18741608
        %v1077 = vmul.f32 %v1068, %v1076
        %v1078 = vadd.f32 %v1077, 1.1283791
        %v1079 = vmul.f32 %v567, %v1078
        %v1080 = vmul.f32 %v1068, 3.8918573e-05
        %v1081 = vadd.f32 %v1080, 0.001143296
        %v1082 = vmul.f32 %v1068, %v1081
        %v1083 = vadd.f32 %v1082, 0.014752088
        %v1084 = vmul.f32 %v1068, %v1083
        %v1085 = vadd.f32 %v1084, 0.112945676
        %v1086 = vmul.f32 %v1068, %v1085
        %v1087 = vadd.f32 %v1086, 0.4994258
        %v1088 = vmul.f32 %v1068, %v1087
        %v1089 = vadd.f32 %v1088, 1.0
        %v1090 = vrcp.pop %v1089
        %v1091 = vmul.f32 %v1089, %v1090
        %v1092 = vsub.f32 1.0, %v1091
        %v1093 = vmul.f32 %v1090, %v1092
        %v1094 = vadd.f32 %v1090, %v1093
        %vm1095 = vweird.f32 %v1089
        %vm1096 = vweird.f32 %v1090
        %vm1097 = vmor %vm1095, %vm1096
        %v1098 = vsel %vm1097, %v1090, %v1094
        %v1099 = vand.u32 2147483647, %v1089
        %vm1100 = vcmp.eq.f32.partialorder %v1099, 8.507059e+37
        %v1101 = vand.u32 %v1089, 2147483648
        %v1102 = vor.u32 1.1754944e-38, %v1101
        %v1103 = vsel %vm1100, %v1102, %v1098
        %v1104 = vmul.f32 %v1079, %v1103
        %v1105 = vmin.f32 %v1104, 1.0
        %v1106 = vmax.f32 %v1105, -1.0
        %v1107 = vmul.f32 %v568, %v568
        %v1108 = vmin.f32 16.0, %v1107
        %v1109 = vmul.f32 %v1108, 2.1237322e-06
        %v1110 = vadd.f32 %v1109, 0.00028619796
        %v1111 = vmul.f32 %v1108, %v1110
        %v1112 = vadd.f32 %v1111, 0.0036580483
        %v1113 = vmul.f32 %v1108, %v1112
        %v1114 = vadd.f32 %v1113, 0.05243302
        %v1115 = vmul.f32 %v1108, %v1114
        %v1116 = vadd.f32 %v1115, 0.18741608
        %v1117 = vmul.f32 %v1108, %v1116
        %v1118 = vadd.f32 %v1117, 1.1283791
        %v1119 = vmul.f32 %v568, %v1118
        %v1120 = vmul.f32 %v1108, 3.8918573e-05
        %v1121 = vadd.f32 %v1120, 0.001143296
        %v1122 = vmul.f32 %v1108, %v1121
        %v1123 = vadd.f32 %v1122, 0.014752088
        %v1124 = vmul.f32 %v1108, %v1123
        %v1125 = vadd.f32 %v1124, 0.112945676
        %v1126 = vmul.f32 %v1108, %v1125
        %v1127 = vadd.f32 %v1126, 0.4994258
        %v1128 = vmul.f32 %v1108, %v1127
        %v1129 = vadd.f32 %v1128, 1.0
        %v1130 = vrcp.pop %v1129
        %v1131 = vmul.f32 %v1129, %v1130
        %v1132 = vsub.f32 1.0, %v1131
        %v1133 = vmul.f32 %v1130, %v1132
        %v1134 = vadd.f32 %v1130, %v1133
        %vm1135 = vweird.f32 %v1129
        %vm1136 = vweird.f32 %v1130
        %vm1137 = vmor %vm1135, %vm1136
        %v1138 = vsel %vm1137, %v1130, %v1134
        %v1139 = vand.u32 2147483647, %v1129
        %vm1140 = vcmp.eq.f32.partialorder %v1139, 8.507059e+37
        %v1141 = vand.u32 %v1129, 2147483648
        %v1142 = vor.u32 1.1754944e-38, %v1141
        %v1143 = vsel %vm1140, %v1142, %v1138
        %v1144 = vmul.f32 %v1119, %v1143
        %v1145 = vmin.f32 %v1144, 1.0
        %v1146 = vmax.f32 %v1145, -1.0
        %v1147 = vmul.f32 %v569, %v569
        %v1148 = vmin.f32 16.0, %v1147
        %v1149 = vmul.f32 %v1148, 2.1237322e-06
        %v1150 = vadd.f32 %v1149, 0.00028619796
        %v1151 = vmul.f32 %v1148, %v1150
        %v1152 = vadd.f32 %v1151, 0.0036580483
        %v1153 = vmul.f32 %v1148, %v1152
        %v1154 = vadd.f32 %v1153, 0.05243302
        %v1155 = vmul.f32 %v1148, %v1154
        %v1156 = vadd.f32 %v1155, 0.18741608
        %v1157 = vmul.f32 %v1148, %v1156
        %v1158 = vadd.f32 %v1157, 1.1283791
        %v1159 = vmul.f32 %v569, %v1158
        %v1160 = vmul.f32 %v1148, 3.8918573e-05
        %v1161 = vadd.f32 %v1160, 0.001143296
        %v1162 = vmul.f32 %v1148, %v1161
        %v1163 = vadd.f32 %v1162, 0.014752088
        %v1164 = vmul.f32 %v1148, %v1163
        %v1165 = vadd.f32 %v1164, 0.112945676
        %v1166 = vmul.f32 %v1148, %v1165
        %v1167 = vadd.f32 %v1166, 0.4994258
        %v1168 = vmul.f32 %v1148, %v1167
        %v1169 = vadd.f32 %v1168, 1.0
        %v1170 = vrcp.pop %v1169
        %v1171 = vmul.f32 %v1169, %v1170
        %v1172 = vsub.f32 1.0, %v1171
        %v1173 = vmul.f32 %v1170, %v1172
        %v1174 = vadd.f32 %v1170, %v1173
        %vm1175 = vweird.f32 %v1169
        %vm1176 = vweird.f32 %v1170
        %vm1177 = vmor %vm1175, %vm1176
        %v1178 = vsel %vm1177, %v1170, %v1174
        %v1179 = vand.u32 2147483647, %v1169
        %vm1180 = vcmp.eq.f32.partialorder %v1179, 8.507059e+37
        %v1181 = vand.u32 %v1169, 2147483648
        %v1182 = vor.u32 1.1754944e-38, %v1181
        %v1183 = vsel %vm1180, %v1182, %v1178
        %v1184 = vmul.f32 %v1159, %v1183
        %v1185 = vmin.f32 %v1184, 1.0
        %v1186 = vmax.f32 %v1185, -1.0
        %v1187 = vmul.f32 %v570, %v570
        %v1188 = vmin.f32 16.0, %v1187
        %v1189 = vmul.f32 %v1188, 2.1237322e-06
        %v1190 = vadd.f32 %v1189, 0.00028619796
        %v1191 = vmul.f32 %v1188, %v1190
        %v1192 = vadd.f32 %v1191, 0.0036580483
        %v1193 = vmul.f32 %v1188, %v1192
        %v1194 = vadd.f32 %v1193, 0.05243302
        %v1195 = vmul.f32 %v1188, %v1194
        %v1196 = vadd.f32 %v1195, 0.18741608
        %v1197 = vmul.f32 %v1188, %v1196
        %v1198 = vadd.f32 %v1197, 1.1283791
        %v1199 = vmul.f32 %v570, %v1198
        %v1200 = vmul.f32 %v1188, 3.8918573e-05
        %v1201 = vadd.f32 %v1200, 0.001143296
        %v1202 = vmul.f32 %v1188, %v1201
        %v1203 = vadd.f32 %v1202, 0.014752088
        %v1204 = vmul.f32 %v1188, %v1203
        %v1205 = vadd.f32 %v1204, 0.112945676
        %v1206 = vmul.f32 %v1188, %v1205
        %v1207 = vadd.f32 %v1206, 0.4994258
        %v1208 = vmul.f32 %v1188, %v1207
        %v1209 = vadd.f32 %v1208, 1.0
        %v1210 = vrcp.pop %v1209
        %v1211 = vmul.f32 %v1209, %v1210
        %v1212 = vsub.f32 1.0, %v1211
        %v1213 = vmul.f32 %v1210, %v1212
        %v1214 = vadd.f32 %v1210, %v1213
        %vm1215 = vweird.f32 %v1209
        %vm1216 = vweird.f32 %v1210
        %vm1217 = vmor %vm1215, %vm1216
        %v1218 = vsel %vm1217, %v1210, %v1214
        %v1219 = vand.u32 2147483647, %v1209
        %vm1220 = vcmp.eq.f32.partialorder %v1219, 8.507059e+37
        %v1221 = vand.u32 %v1209, 2147483648
        %v1222 = vor.u32 1.1754944e-38, %v1221
        %v1223 = vsel %vm1220, %v1222, %v1218
        %v1224 = vmul.f32 %v1199, %v1223
        %v1225 = vmin.f32 %v1224, 1.0
        %v1226 = vmax.f32 %v1225, -1.0
        %v1227 = vmul.f32 %v571, %v571
        %v1228 = vmin.f32 16.0, %v1227
        %v1229 = vmul.f32 %v1228, 2.1237322e-06
        %v1230 = vadd.f32 %v1229, 0.00028619796
        %v1231 = vmul.f32 %v1228, %v1230
        %v1232 = vadd.f32 %v1231, 0.0036580483
        %v1233 = vmul.f32 %v1228, %v1232
        %v1234 = vadd.f32 %v1233, 0.05243302
        %v1235 = vmul.f32 %v1228, %v1234
        %v1236 = vadd.f32 %v1235, 0.18741608
        %v1237 = vmul.f32 %v1228, %v1236
        %v1238 = vadd.f32 %v1237, 1.1283791
        %v1239 = vmul.f32 %v571, %v1238
        %v1240 = vmul.f32 %v1228, 3.8918573e-05
        %v1241 = vadd.f32 %v1240, 0.001143296
        %v1242 = vmul.f32 %v1228, %v1241
        %v1243 = vadd.f32 %v1242, 0.014752088
        %v1244 = vmul.f32 %v1228, %v1243
        %v1245 = vadd.f32 %v1244, 0.112945676
        %v1246 = vmul.f32 %v1228, %v1245
        %v1247 = vadd.f32 %v1246, 0.4994258
        %v1248 = vmul.f32 %v1228, %v1247
        %v1249 = vadd.f32 %v1248, 1.0
        %v1250 = vrcp.pop %v1249
        %v1251 = vmul.f32 %v1249, %v1250
        %v1252 = vsub.f32 1.0, %v1251
        %v1253 = vmul.f32 %v1250, %v1252
        %v1254 = vadd.f32 %v1250, %v1253
        %vm1255 = vweird.f32 %v1249
        %vm1256 = vweird.f32 %v1250
        %vm1257 = vmor %vm1255, %vm1256
        %v1258 = vsel %vm1257, %v1250, %v1254
        %v1259 = vand.u32 2147483647, %v1249
        %vm1260 = vcmp.eq.f32.partialorder %v1259, 8.507059e+37
        %v1261 = vand.u32 %v1249, 2147483648
        %v1262 = vor.u32 1.1754944e-38, %v1261
        %v1263 = vsel %vm1260, %v1262, %v1258
        %v1264 = vmul.f32 %v1239, %v1263
        %v1265 = vmin.f32 %v1264, 1.0
        %v1266 = vmax.f32 %v1265, -1.0
        %v1267 = vmul.f32 %v572, %v572
        %v1268 = vmin.f32 16.0, %v1267
        %v1269 = vmul.f32 %v1268, 2.1237322e-06
        %v1270 = vadd.f32 %v1269, 0.00028619796
        %v1271 = vmul.f32 %v1268, %v1270
        %v1272 = vadd.f32 %v1271, 0.0036580483
        %v1273 = vmul.f32 %v1268, %v1272
        %v1274 = vadd.f32 %v1273, 0.05243302
        %v1275 = vmul.f32 %v1268, %v1274
        %v1276 = vadd.f32 %v1275, 0.18741608
        %v1277 = vmul.f32 %v1268, %v1276
        %v1278 = vadd.f32 %v1277, 1.1283791
        %v1279 = vmul.f32 %v572, %v1278
        %v1280 = vmul.f32 %v1268, 3.8918573e-05
        %v1281 = vadd.f32 %v1280, 0.001143296
        %v1282 = vmul.f32 %v1268, %v1281
        %v1283 = vadd.f32 %v1282, 0.014752088
        %v1284 = vmul.f32 %v1268, %v1283
        %v1285 = vadd.f32 %v1284, 0.112945676
        %v1286 = vmul.f32 %v1268, %v1285
        %v1287 = vadd.f32 %v1286, 0.4994258
        %v1288 = vmul.f32 %v1268, %v1287
        %v1289 = vadd.f32 %v1288, 1.0
        %v1290 = vrcp.pop %v1289
        %v1291 = vmul.f32 %v1289, %v1290
        %v1292 = vsub.f32 1.0, %v1291
        %v1293 = vmul.f32 %v1290, %v1292
        %v1294 = vadd.f32 %v1290, %v1293
        %vm1295 = vweird.f32 %v1289
        %vm1296 = vweird.f32 %v1290
        %vm1297 = vmor %vm1295, %vm1296
        %v1298 = vsel %vm1297, %v1290, %v1294
        %v1299 = vand.u32 2147483647, %v1289
        %vm1300 = vcmp.eq.f32.partialorder %v1299, 8.507059e+37
        %v1301 = vand.u32 %v1289, 2147483648
        %v1302 = vor.u32 1.1754944e-38, %v1301
        %v1303 = vsel %vm1300, %v1302, %v1298
        %v1304 = vmul.f32 %v1279, %v1303
        %v1305 = vmin.f32 %v1304, 1.0
        %v1306 = vmax.f32 %v1305, -1.0
        %v1307 = vmul.f32 %v573, %v573
        %v1308 = vmin.f32 16.0, %v1307
        %v1309 = vmul.f32 %v1308, 2.1237322e-06
        %v1310 = vadd.f32 %v1309, 0.00028619796
        %v1311 = vmul.f32 %v1308, %v1310
        %v1312 = vadd.f32 %v1311, 0.0036580483
        %v1313 = vmul.f32 %v1308, %v1312
        %v1314 = vadd.f32 %v1313, 0.05243302
        %v1315 = vmul.f32 %v1308, %v1314
        %v1316 = vadd.f32 %v1315, 0.18741608
        %v1317 = vmul.f32 %v1308, %v1316
        %v1318 = vadd.f32 %v1317, 1.1283791
        %v1319 = vmul.f32 %v573, %v1318
        %v1320 = vmul.f32 %v1308, 3.8918573e-05
        %v1321 = vadd.f32 %v1320, 0.001143296
        %v1322 = vmul.f32 %v1308, %v1321
        %v1323 = vadd.f32 %v1322, 0.014752088
        %v1324 = vmul.f32 %v1308, %v1323
        %v1325 = vadd.f32 %v1324, 0.112945676
        %v1326 = vmul.f32 %v1308, %v1325
        %v1327 = vadd.f32 %v1326, 0.4994258
        %v1328 = vmul.f32 %v1308, %v1327
        %v1329 = vadd.f32 %v1328, 1.0
        %v1330 = vrcp.pop %v1329
        %v1331 = vmul.f32 %v1329, %v1330
        %v1332 = vsub.f32 1.0, %v1331
        %v1333 = vmul.f32 %v1330, %v1332
        %v1334 = vadd.f32 %v1330, %v1333
        %vm1335 = vweird.f32 %v1329
        %vm1336 = vweird.f32 %v1330
        %vm1337 = vmor %vm1335, %vm1336
        %v1338 = vsel %vm1337, %v1330, %v1334
        %v1339 = vand.u32 2147483647, %v1329
        %vm1340 = vcmp.eq.f32.partialorder %v1339, 8.507059e+37
        %v1341 = vand.u32 %v1329, 2147483648
        %v1342 = vor.u32 1.1754944e-38, %v1341
        %v1343 = vsel %vm1340, %v1342, %v1338
        %v1344 = vmul.f32 %v1319, %v1343
        %v1345 = vmin.f32 %v1344, 1.0
        %v1346 = vmax.f32 %v1345, -1.0
        %v1347 = vmul.f32 %v574, %v574
        %v1348 = vmin.f32 16.0, %v1347
        %v1349 = vmul.f32 %v1348, 2.1237322e-06
        %v1350 = vadd.f32 %v1349, 0.00028619796
        %v1351 = vmul.f32 %v1348, %v1350
        %v1352 = vadd.f32 %v1351, 0.0036580483
        %v1353 = vmul.f32 %v1348, %v1352
        %v1354 = vadd.f32 %v1353, 0.05243302
        %v1355 = vmul.f32 %v1348, %v1354
        %v1356 = vadd.f32 %v1355, 0.18741608
        %v1357 = vmul.f32 %v1348, %v1356
        %v1358 = vadd.f32 %v1357, 1.1283791
        %v1359 = vmul.f32 %v574, %v1358
        %v1360 = vmul.f32 %v1348, 3.8918573e-05
        %v1361 = vadd.f32 %v1360, 0.001143296
        %v1362 = vmul.f32 %v1348, %v1361
        %v1363 = vadd.f32 %v1362, 0.014752088
        %v1364 = vmul.f32 %v1348, %v1363
        %v1365 = vadd.f32 %v1364, 0.112945676
        %v1366 = vmul.f32 %v1348, %v1365
        %v1367 = vadd.f32 %v1366, 0.4994258
        %v1368 = vmul.f32 %v1348, %v1367
        %v1369 = vadd.f32 %v1368, 1.0
        %v1370 = vrcp.pop %v1369
        %v1371 = vmul.f32 %v1369, %v1370
        %v1372 = vsub.f32 1.0, %v1371
        %v1373 = vmul.f32 %v1370, %v1372
        %v1374 = vadd.f32 %v1370, %v1373
        %vm1375 = vweird.f32 %v1369
        %vm1376 = vweird.f32 %v1370
        %vm1377 = vmor %vm1375, %vm1376
        %v1378 = vsel %vm1377, %v1370, %v1374
        %v1379 = vand.u32 2147483647, %v1369
        %vm1380 = vcmp.eq.f32.partialorder %v1379, 8.507059e+37
        %v1381 = vand.u32 %v1369, 2147483648
        %v1382 = vor.u32 1.1754944e-38, %v1381
        %v1383 = vsel %vm1380, %v1382, %v1378
        %v1384 = vmul.f32 %v1359, %v1383
        %v1385 = vmin.f32 %v1384, 1.0
        %v1386 = vmax.f32 %v1385, -1.0
        %v1387 = vmul.f32 %v575, %v575
        %v1388 = vmin.f32 16.0, %v1387
        %v1389 = vmul.f32 %v1388, 2.1237322e-06
        %v1390 = vadd.f32 %v1389, 0.00028619796
        %v1391 = vmul.f32 %v1388, %v1390
        %v1392 = vadd.f32 %v1391, 0.0036580483
        %v1393 = vmul.f32 %v1388, %v1392
        %v1394 = vadd.f32 %v1393, 0.05243302
        %v1395 = vmul.f32 %v1388, %v1394
        %v1396 = vadd.f32 %v1395, 0.18741608
        %v1397 = vmul.f32 %v1388, %v1396
        %v1398 = vadd.f32 %v1397, 1.1283791
        %v1399 = vmul.f32 %v575, %v1398
        %v1400 = vmul.f32 %v1388, 3.8918573e-05
        %v1401 = vadd.f32 %v1400, 0.001143296
        %v1402 = vmul.f32 %v1388, %v1401
        %v1403 = vadd.f32 %v1402, 0.014752088
        %v1404 = vmul.f32 %v1388, %v1403
        %v1405 = vadd.f32 %v1404, 0.112945676
        %v1406 = vmul.f32 %v1388, %v1405
        %v1407 = vadd.f32 %v1406, 0.4994258
        %v1408 = vmul.f32 %v1388, %v1407
        %v1409 = vadd.f32 %v1408, 1.0
        %v1410 = vrcp.pop %v1409
        %v1411 = vmul.f32 %v1409, %v1410
        %v1412 = vsub.f32 1.0, %v1411
        %v1413 = vmul.f32 %v1410, %v1412
        %v1414 = vadd.f32 %v1410, %v1413
        %vm1415 = vweird.f32 %v1409
        %vm1416 = vweird.f32 %v1410
        %vm1417 = vmor %vm1415, %vm1416
        %v1418 = vsel %vm1417, %v1410, %v1414
        %v1419 = vand.u32 2147483647, %v1409
        %vm1420 = vcmp.eq.f32.partialorder %v1419, 8.507059e+37
        %v1421 = vand.u32 %v1409, 2147483648
        %v1422 = vor.u32 1.1754944e-38, %v1421
        %v1423 = vsel %vm1420, %v1422, %v1418
        %v1424 = vmul.f32 %v1399, %v1423
        %v1425 = vmin.f32 %v1424, 1.0
        %v1426 = vmax.f32 %v1425, -1.0
        %v1427 = vmul.f32 %v576, %v576
        %v1428 = vmin.f32 16.0, %v1427
        %v1429 = vmul.f32 %v1428, 2.1237322e-06
        %v1430 = vadd.f32 %v1429, 0.00028619796
        %v1431 = vmul.f32 %v1428, %v1430
        %v1432 = vadd.f32 %v1431, 0.0036580483
        %v1433 = vmul.f32 %v1428, %v1432
        %v1434 = vadd.f32 %v1433, 0.05243302
        %v1435 = vmul.f32 %v1428, %v1434
        %v1436 = vadd.f32 %v1435, 0.18741608
        %v1437 = vmul.f32 %v1428, %v1436
        %v1438 = vadd.f32 %v1437, 1.1283791
        %v1439 = vmul.f32 %v576, %v1438
        %v1440 = vmul.f32 %v1428, 3.8918573e-05
        %v1441 = vadd.f32 %v1440, 0.001143296
        %v1442 = vmul.f32 %v1428, %v1441
        %v1443 = vadd.f32 %v1442, 0.014752088
        %v1444 = vmul.f32 %v1428, %v1443
        %v1445 = vadd.f32 %v1444, 0.112945676
        %v1446 = vmul.f32 %v1428, %v1445
        %v1447 = vadd.f32 %v1446, 0.4994258
        %v1448 = vmul.f32 %v1428, %v1447
        %v1449 = vadd.f32 %v1448, 1.0
        %v1450 = vrcp.pop %v1449
        %v1451 = vmul.f32 %v1449, %v1450
        %v1452 = vsub.f32 1.0, %v1451
        %v1453 = vmul.f32 %v1450, %v1452
        %v1454 = vadd.f32 %v1450, %v1453
        %vm1455 = vweird.f32 %v1449
        %vm1456 = vweird.f32 %v1450
        %vm1457 = vmor %vm1455, %vm1456
        %v1458 = vsel %vm1457, %v1450, %v1454
        %v1459 = vand.u32 2147483647, %v1449
        %vm1460 = vcmp.eq.f32.partialorder %v1459, 8.507059e+37
        %v1461 = vand.u32 %v1449, 2147483648
        %v1462 = vor.u32 1.1754944e-38, %v1461
        %v1463 = vsel %vm1460, %v1462, %v1458
        %v1464 = vmul.f32 %v1439, %v1463
        %v1465 = vmin.f32 %v1464, 1.0
        %v1466 = vmax.f32 %v1465, -1.0
        %v1467 = vmul.f32 %v577, %v577
        %v1468 = vmin.f32 16.0, %v1467
        %v1469 = vmul.f32 %v1468, 2.1237322e-06
        %v1470 = vadd.f32 %v1469, 0.00028619796
        %v1471 = vmul.f32 %v1468, %v1470
        %v1472 = vadd.f32 %v1471, 0.0036580483
        %v1473 = vmul.f32 %v1468, %v1472
        %v1474 = vadd.f32 %v1473, 0.05243302
        %v1475 = vmul.f32 %v1468, %v1474
        %v1476 = vadd.f32 %v1475, 0.18741608
        %v1477 = vmul.f32 %v1468, %v1476
        %v1478 = vadd.f32 %v1477, 1.1283791
        %v1479 = vmul.f32 %v577, %v1478
        %v1480 = vmul.f32 %v1468, 3.8918573e-05
        %v1481 = vadd.f32 %v1480, 0.001143296
        %v1482 = vmul.f32 %v1468, %v1481
        %v1483 = vadd.f32 %v1482, 0.014752088
        %v1484 = vmul.f32 %v1468, %v1483
        %v1485 = vadd.f32 %v1484, 0.112945676
        %v1486 = vmul.f32 %v1468, %v1485
        %v1487 = vadd.f32 %v1486, 0.4994258
        %v1488 = vmul.f32 %v1468, %v1487
        %v1489 = vadd.f32 %v1488, 1.0
        %v1490 = vrcp.pop %v1489
        %v1491 = vmul.f32 %v1489, %v1490
        %v1492 = vsub.f32 1.0, %v1491
        %v1493 = vmul.f32 %v1490, %v1492
        %v1494 = vadd.f32 %v1490, %v1493
        %vm1495 = vweird.f32 %v1489
        %vm1496 = vweird.f32 %v1490
        %vm1497 = vmor %vm1495, %vm1496
        %v1498 = vsel %vm1497, %v1490, %v1494
        %v1499 = vand.u32 2147483647, %v1489
        %vm1500 = vcmp.eq.f32.partialorder %v1499, 8.507059e+37
        %v1501 = vand.u32 %v1489, 2147483648
        %v1502 = vor.u32 1.1754944e-38, %v1501
        %v1503 = vsel %vm1500, %v1502, %v1498
        %v1504 = vmul.f32 %v1479, %v1503
        %v1505 = vmin.f32 %v1504, 1.0
        %v1506 = vmax.f32 %v1505, -1.0
        %v1507 = vmul.f32 %v578, %v578
        %v1508 = vmin.f32 16.0, %v1507
        %v1509 = vmul.f32 %v1508, 2.1237322e-06
        %v1510 = vadd.f32 %v1509, 0.00028619796
        %v1511 = vmul.f32 %v1508, %v1510
        %v1512 = vadd.f32 %v1511, 0.0036580483
        %v1513 = vmul.f32 %v1508, %v1512
        %v1514 = vadd.f32 %v1513, 0.05243302
        %v1515 = vmul.f32 %v1508, %v1514
        %v1516 = vadd.f32 %v1515, 0.18741608
        %v1517 = vmul.f32 %v1508, %v1516
        %v1518 = vadd.f32 %v1517, 1.1283791
        %v1519 = vmul.f32 %v578, %v1518
        %v1520 = vmul.f32 %v1508, 3.8918573e-05
        %v1521 = vadd.f32 %v1520, 0.001143296
        %v1522 = vmul.f32 %v1508, %v1521
        %v1523 = vadd.f32 %v1522, 0.014752088
        %v1524 = vmul.f32 %v1508, %v1523
        %v1525 = vadd.f32 %v1524, 0.112945676
        %v1526 = vmul.f32 %v1508, %v1525
        %v1527 = vadd.f32 %v1526, 0.4994258
        %v1528 = vmul.f32 %v1508, %v1527
        %v1529 = vadd.f32 %v1528, 1.0
        %v1530 = vrcp.pop %v1529
        %v1531 = vmul.f32 %v1529, %v1530
        %v1532 = vsub.f32 1.0, %v1531
        %v1533 = vmul.f32 %v1530, %v1532
        %v1534 = vadd.f32 %v1530, %v1533
        %vm1535 = vweird.f32 %v1529
        %vm1536 = vweird.f32 %v1530
        %vm1537 = vmor %vm1535, %vm1536
        %v1538 = vsel %vm1537, %v1530, %v1534
        %v1539 = vand.u32 2147483647, %v1529
        %vm1540 = vcmp.eq.f32.partialorder %v1539, 8.507059e+37
        %v1541 = vand.u32 %v1529, 2147483648
        %v1542 = vor.u32 1.1754944e-38, %v1541
        %v1543 = vsel %vm1540, %v1542, %v1538
        %v1544 = vmul.f32 %v1519, %v1543
        %v1545 = vmin.f32 %v1544, 1.0
        %v1546 = vmax.f32 %v1545, -1.0
        %v1547 = vmul.f32 %v579, %v579
        %v1548 = vmin.f32 16.0, %v1547
        %v1549 = vmul.f32 %v1548, 2.1237322e-06
        %v1550 = vadd.f32 %v1549, 0.00028619796
        %v1551 = vmul.f32 %v1548, %v1550
        %v1552 = vadd.f32 %v1551, 0.0036580483
        %v1553 = vmul.f32 %v1548, %v1552
        %v1554 = vadd.f32 %v1553, 0.05243302
        %v1555 = vmul.f32 %v1548, %v1554
        %v1556 = vadd.f32 %v1555, 0.18741608
        %v1557 = vmul.f32 %v1548, %v1556
        %v1558 = vadd.f32 %v1557, 1.1283791
        %v1559 = vmul.f32 %v579, %v1558
        %v1560 = vmul.f32 %v1548, 3.8918573e-05
        %v1561 = vadd.f32 %v1560, 0.001143296
        %v1562 = vmul.f32 %v1548, %v1561
        %v1563 = vadd.f32 %v1562, 0.014752088
        %v1564 = vmul.f32 %v1548, %v1563
        %v1565 = vadd.f32 %v1564, 0.112945676
        %v1566 = vmul.f32 %v1548, %v1565
        %v1567 = vadd.f32 %v1566, 0.4994258
        %v1568 = vmul.f32 %v1548, %v1567
        %v1569 = vadd.f32 %v1568, 1.0
        %v1570 = vrcp.pop %v1569
        %v1571 = vmul.f32 %v1569, %v1570
        %v1572 = vsub.f32 1.0, %v1571
        %v1573 = vmul.f32 %v1570, %v1572
        %v1574 = vadd.f32 %v1570, %v1573
        %vm1575 = vweird.f32 %v1569
        %vm1576 = vweird.f32 %v1570
        %vm1577 = vmor %vm1575, %vm1576
        %v1578 = vsel %vm1577, %v1570, %v1574
        %v1579 = vand.u32 2147483647, %v1569
        %vm1580 = vcmp.eq.f32.partialorder %v1579, 8.507059e+37
        %v1581 = vand.u32 %v1569, 2147483648
        %v1582 = vor.u32 1.1754944e-38, %v1581
        %v1583 = vsel %vm1580, %v1582, %v1578
        %v1584 = vmul.f32 %v1559, %v1583
        %v1585 = vmin.f32 %v1584, 1.0
        %v1586 = vmax.f32 %v1585, -1.0
        %v1587 = vmul.f32 %v580, %v580
        %v1588 = vmin.f32 16.0, %v1587
        %v1589 = vmul.f32 %v1588, 2.1237322e-06
        %v1590 = vadd.f32 %v1589, 0.00028619796
        %v1591 = vmul.f32 %v1588, %v1590
        %v1592 = vadd.f32 %v1591, 0.0036580483
        %v1593 = vmul.f32 %v1588, %v1592
        %v1594 = vadd.f32 %v1593, 0.05243302
        %v1595 = vmul.f32 %v1588, %v1594
        %v1596 = vadd.f32 %v1595, 0.18741608
        %v1597 = vmul.f32 %v1588, %v1596
        %v1598 = vadd.f32 %v1597, 1.1283791
        %v1599 = vmul.f32 %v580, %v1598
        %v1600 = vmul.f32 %v1588, 3.8918573e-05
        %v1601 = vadd.f32 %v1600, 0.001143296
        %v1602 = vmul.f32 %v1588, %v1601
        %v1603 = vadd.f32 %v1602, 0.014752088
        %v1604 = vmul.f32 %v1588, %v1603
        %v1605 = vadd.f32 %v1604, 0.112945676
        %v1606 = vmul.f32 %v1588, %v1605
        %v1607 = vadd.f32 %v1606, 0.4994258
        %v1608 = vmul.f32 %v1588, %v1607
        %v1609 = vadd.f32 %v1608, 1.0
        %v1610 = vrcp.pop %v1609
        %v1611 = vmul.f32 %v1609, %v1610
        %v1612 = vsub.f32 1.0, %v1611
        %v1613 = vmul.f32 %v1610, %v1612
        %v1614 = vadd.f32 %v1610, %v1613
        %vm1615 = vweird.f32 %v1609
        %vm1616 = vweird.f32 %v1610
        %vm1617 = vmor %vm1615, %vm1616
        %v1618 = vsel %vm1617, %v1610, %v1614
        %v1619 = vand.u32 2147483647, %v1609
        %vm1620 = vcmp.eq.f32.partialorder %v1619, 8.507059e+37
        %v1621 = vand.u32 %v1609, 2147483648
        %v1622 = vor.u32 1.1754944e-38, %v1621
        %v1623 = vsel %vm1620, %v1622, %v1618
        %v1624 = vmul.f32 %v1599, %v1623
        %v1625 = vmin.f32 %v1624, 1.0
        %v1626 = vmax.f32 %v1625, -1.0
        %v1627 = vmul.f32 %v581, %v581
        %v1628 = vmin.f32 16.0, %v1627
        %v1629 = vmul.f32 %v1628, 2.1237322e-06
        %v1630 = vadd.f32 %v1629, 0.00028619796
        %v1631 = vmul.f32 %v1628, %v1630
        %v1632 = vadd.f32 %v1631, 0.0036580483
        %v1633 = vmul.f32 %v1628, %v1632
        %v1634 = vadd.f32 %v1633, 0.05243302
        %v1635 = vmul.f32 %v1628, %v1634
        %v1636 = vadd.f32 %v1635, 0.18741608
        %v1637 = vmul.f32 %v1628, %v1636
        %v1638 = vadd.f32 %v1637, 1.1283791
        %v1639 = vmul.f32 %v581, %v1638
        %v1640 = vmul.f32 %v1628, 3.8918573e-05
        %v1641 = vadd.f32 %v1640, 0.001143296
        %v1642 = vmul.f32 %v1628, %v1641
        %v1643 = vadd.f32 %v1642, 0.014752088
        %v1644 = vmul.f32 %v1628, %v1643
        %v1645 = vadd.f32 %v1644, 0.112945676
        %v1646 = vmul.f32 %v1628, %v1645
        %v1647 = vadd.f32 %v1646, 0.4994258
        %v1648 = vmul.f32 %v1628, %v1647
        %v1649 = vadd.f32 %v1648, 1.0
        %v1650 = vrcp.pop %v1649
        %v1651 = vmul.f32 %v1649, %v1650
        %v1652 = vsub.f32 1.0, %v1651
        %v1653 = vmul.f32 %v1650, %v1652
        %v1654 = vadd.f32 %v1650, %v1653
        %vm1655 = vweird.f32 %v1649
        %vm1656 = vweird.f32 %v1650
        %vm1657 = vmor %vm1655, %vm1656
        %v1658 = vsel %vm1657, %v1650, %v1654
        %v1659 = vand.u32 2147483647, %v1649
        %vm1660 = vcmp.eq.f32.partialorder %v1659, 8.507059e+37
        %v1661 = vand.u32 %v1649, 2147483648
        %v1662 = vor.u32 1.1754944e-38, %v1661
        %v1663 = vsel %vm1660, %v1662, %v1658
        %v1664 = vmul.f32 %v1639, %v1663
        %v1665 = vmin.f32 %v1664, 1.0
        %v1666 = vmax.f32 %v1665, -1.0
        %v1667 = vmul.f32 %v582, %v582
        %v1668 = vmin.f32 16.0, %v1667
        %v1669 = vmul.f32 %v1668, 2.1237322e-06
        %v1670 = vadd.f32 %v1669, 0.00028619796
        %v1671 = vmul.f32 %v1668, %v1670
        %v1672 = vadd.f32 %v1671, 0.0036580483
        %v1673 = vmul.f32 %v1668, %v1672
        %v1674 = vadd.f32 %v1673, 0.05243302
        %v1675 = vmul.f32 %v1668, %v1674
        %v1676 = vadd.f32 %v1675, 0.18741608
        %v1677 = vmul.f32 %v1668, %v1676
        %v1678 = vadd.f32 %v1677, 1.1283791
        %v1679 = vmul.f32 %v582, %v1678
        %v1680 = vmul.f32 %v1668, 3.8918573e-05
        %v1681 = vadd.f32 %v1680, 0.001143296
        %v1682 = vmul.f32 %v1668, %v1681
        %v1683 = vadd.f32 %v1682, 0.014752088
        %v1684 = vmul.f32 %v1668, %v1683
        %v1685 = vadd.f32 %v1684, 0.112945676
        %v1686 = vmul.f32 %v1668, %v1685
        %v1687 = vadd.f32 %v1686, 0.4994258
        %v1688 = vmul.f32 %v1668, %v1687
        %v1689 = vadd.f32 %v1688, 1.0
        %v1690 = vrcp.pop %v1689
        %v1691 = vmul.f32 %v1689, %v1690
        %v1692 = vsub.f32 1.0, %v1691
        %v1693 = vmul.f32 %v1690, %v1692
        %v1694 = vadd.f32 %v1690, %v1693
        %vm1695 = vweird.f32 %v1689
        %vm1696 = vweird.f32 %v1690
        %vm1697 = vmor %vm1695, %vm1696
        %v1698 = vsel %vm1697, %v1690, %v1694
        %v1699 = vand.u32 2147483647, %v1689
        %vm1700 = vcmp.eq.f32.partialorder %v1699, 8.507059e+37
        %v1701 = vand.u32 %v1689, 2147483648
        %v1702 = vor.u32 1.1754944e-38, %v1701
        %v1703 = vsel %vm1700, %v1702, %v1698
        %v1704 = vmul.f32 %v1679, %v1703
        %v1705 = vmin.f32 %v1704, 1.0
        %v1706 = vmax.f32 %v1705, -1.0
        %v1707 = vmul.f32 %v583, %v583
        %v1708 = vmin.f32 16.0, %v1707
        %v1709 = vmul.f32 %v1708, 2.1237322e-06
        %v1710 = vadd.f32 %v1709, 0.00028619796
        %v1711 = vmul.f32 %v1708, %v1710
        %v1712 = vadd.f32 %v1711, 0.0036580483
        %v1713 = vmul.f32 %v1708, %v1712
        %v1714 = vadd.f32 %v1713, 0.05243302
        %v1715 = vmul.f32 %v1708, %v1714
        %v1716 = vadd.f32 %v1715, 0.18741608
        %v1717 = vmul.f32 %v1708, %v1716
        %v1718 = vadd.f32 %v1717, 1.1283791
        %v1719 = vmul.f32 %v583, %v1718
        %v1720 = vmul.f32 %v1708, 3.8918573e-05
        %v1721 = vadd.f32 %v1720, 0.001143296
        %v1722 = vmul.f32 %v1708, %v1721
        %v1723 = vadd.f32 %v1722, 0.014752088
        %v1724 = vmul.f32 %v1708, %v1723
        %v1725 = vadd.f32 %v1724, 0.112945676
        %v1726 = vmul.f32 %v1708, %v1725
        %v1727 = vadd.f32 %v1726, 0.4994258
        %v1728 = vmul.f32 %v1708, %v1727
        %v1729 = vadd.f32 %v1728, 1.0
        %v1730 = vrcp.pop %v1729
        %v1731 = vmul.f32 %v1729, %v1730
        %v1732 = vsub.f32 1.0, %v1731
        %v1733 = vmul.f32 %v1730, %v1732
        %v1734 = vadd.f32 %v1730, %v1733
        %vm1735 = vweird.f32 %v1729
        %vm1736 = vweird.f32 %v1730
        %vm1737 = vmor %vm1735, %vm1736
        %v1738 = vsel %vm1737, %v1730, %v1734
        %v1739 = vand.u32 2147483647, %v1729
        %vm1740 = vcmp.eq.f32.partialorder %v1739, 8.507059e+37
        %v1741 = vand.u32 %v1729, 2147483648
        %v1742 = vor.u32 1.1754944e-38, %v1741
        %v1743 = vsel %vm1740, %v1742, %v1738
        %v1744 = vmul.f32 %v1719, %v1743
        %v1745 = vmin.f32 %v1744, 1.0
        %v1746 = vmax.f32 %v1745, -1.0
        %v1747 = vmul.f32 %v584, %v584
        %v1748 = vmin.f32 16.0, %v1747
        %v1749 = vmul.f32 %v1748, 2.1237322e-06
        %v1750 = vadd.f32 %v1749, 0.00028619796
        %v1751 = vmul.f32 %v1748, %v1750
        %v1752 = vadd.f32 %v1751, 0.0036580483
        %v1753 = vmul.f32 %v1748, %v1752
        %v1754 = vadd.f32 %v1753, 0.05243302
        %v1755 = vmul.f32 %v1748, %v1754
        %v1756 = vadd.f32 %v1755, 0.18741608
        %v1757 = vmul.f32 %v1748, %v1756
        %v1758 = vadd.f32 %v1757, 1.1283791
        %v1759 = vmul.f32 %v584, %v1758
        %v1760 = vmul.f32 %v1748, 3.8918573e-05
        %v1761 = vadd.f32 %v1760, 0.001143296
        %v1762 = vmul.f32 %v1748, %v1761
        %v1763 = vadd.f32 %v1762, 0.014752088
        %v1764 = vmul.f32 %v1748, %v1763
        %v1765 = vadd.f32 %v1764, 0.112945676
        %v1766 = vmul.f32 %v1748, %v1765
        %v1767 = vadd.f32 %v1766, 0.4994258
        %v1768 = vmul.f32 %v1748, %v1767
        %v1769 = vadd.f32 %v1768, 1.0
        %v1770 = vrcp.pop %v1769
        %v1771 = vmul.f32 %v1769, %v1770
        %v1772 = vsub.f32 1.0, %v1771
        %v1773 = vmul.f32 %v1770, %v1772
        %v1774 = vadd.f32 %v1770, %v1773
        %vm1775 = vweird.f32 %v1769
        %vm1776 = vweird.f32 %v1770
        %vm1777 = vmor %vm1775, %vm1776
        %v1778 = vsel %vm1777, %v1770, %v1774
        %v1779 = vand.u32 2147483647, %v1769
        %vm1780 = vcmp.eq.f32.partialorder %v1779, 8.507059e+37
        %v1781 = vand.u32 %v1769, 2147483648
        %v1782 = vor.u32 1.1754944e-38, %v1781
        %v1783 = vsel %vm1780, %v1782, %v1778
        %v1784 = vmul.f32 %v1759, %v1783
        %v1785 = vmin.f32 %v1784, 1.0
        %v1786 = vmax.f32 %v1785, -1.0
        %v1787 = vmul.f32 %v585, %v585
        %v1788 = vmin.f32 16.0, %v1787
        %v1789 = vmul.f32 %v1788, 2.1237322e-06
        %v1790 = vadd.f32 %v1789, 0.00028619796
        %v1791 = vmul.f32 %v1788, %v1790
        %v1792 = vadd.f32 %v1791, 0.0036580483
        %v1793 = vmul.f32 %v1788, %v1792
        %v1794 = vadd.f32 %v1793, 0.05243302
        %v1795 = vmul.f32 %v1788, %v1794
        %v1796 = vadd.f32 %v1795, 0.18741608
        %v1797 = vmul.f32 %v1788, %v1796
        %v1798 = vadd.f32 %v1797, 1.1283791
        %v1799 = vmul.f32 %v585, %v1798
        %v1800 = vmul.f32 %v1788, 3.8918573e-05
        %v1801 = vadd.f32 %v1800, 0.001143296
        %v1802 = vmul.f32 %v1788, %v1801
        %v1803 = vadd.f32 %v1802, 0.014752088
        %v1804 = vmul.f32 %v1788, %v1803
        %v1805 = vadd.f32 %v1804, 0.112945676
        %v1806 = vmul.f32 %v1788, %v1805
        %v1807 = vadd.f32 %v1806, 0.4994258
        %v1808 = vmul.f32 %v1788, %v1807
        %v1809 = vadd.f32 %v1808, 1.0
        %v1810 = vrcp.pop %v1809
        %v1811 = vmul.f32 %v1809, %v1810
        %v1812 = vsub.f32 1.0, %v1811
        %v1813 = vmul.f32 %v1810, %v1812
        %v1814 = vadd.f32 %v1810, %v1813
        %vm1815 = vweird.f32 %v1809
        %vm1816 = vweird.f32 %v1810
        %vm1817 = vmor %vm1815, %vm1816
        %v1818 = vsel %vm1817, %v1810, %v1814
        %v1819 = vand.u32 2147483647, %v1809
        %vm1820 = vcmp.eq.f32.partialorder %v1819, 8.507059e+37
        %v1821 = vand.u32 %v1809, 2147483648
        %v1822 = vor.u32 1.1754944e-38, %v1821
        %v1823 = vsel %vm1820, %v1822, %v1818
        %v1824 = vmul.f32 %v1799, %v1823
        %v1825 = vmin.f32 %v1824, 1.0
        %v1826 = vmax.f32 %v1825, -1.0
        %v1827 = vmul.f32 %v586, %v586
        %v1828 = vmin.f32 16.0, %v1827
        %v1829 = vmul.f32 %v1828, 2.1237322e-06
        %v1830 = vadd.f32 %v1829, 0.00028619796
        %v1831 = vmul.f32 %v1828, %v1830
        %v1832 = vadd.f32 %v1831, 0.0036580483
        %v1833 = vmul.f32 %v1828, %v1832
        %v1834 = vadd.f32 %v1833, 0.05243302
        %v1835 = vmul.f32 %v1828, %v1834
        %v1836 = vadd.f32 %v1835, 0.18741608
        %v1837 = vmul.f32 %v1828, %v1836
        %v1838 = vadd.f32 %v1837, 1.1283791
        %v1839 = vmul.f32 %v586, %v1838
        %v1840 = vmul.f32 %v1828, 3.8918573e-05
        %v1841 = vadd.f32 %v1840, 0.001143296
        %v1842 = vmul.f32 %v1828, %v1841
        %v1843 = vadd.f32 %v1842, 0.014752088
        %v1844 = vmul.f32 %v1828, %v1843
        %v1845 = vadd.f32 %v1844, 0.112945676
        %v1846 = vmul.f32 %v1828, %v1845
        %v1847 = vadd.f32 %v1846, 0.4994258
        %v1848 = vmul.f32 %v1828, %v1847
        %v1849 = vadd.f32 %v1848, 1.0
        %v1850 = vrcp.pop %v1849
        %v1851 = vmul.f32 %v1849, %v1850
        %v1852 = vsub.f32 1.0, %v1851
        %v1853 = vmul.f32 %v1850, %v1852
        %v1854 = vadd.f32 %v1850, %v1853
        %vm1855 = vweird.f32 %v1849
        %vm1856 = vweird.f32 %v1850
        %vm1857 = vmor %vm1855, %vm1856
        %v1858 = vsel %vm1857, %v1850, %v1854
        %v1859 = vand.u32 2147483647, %v1849
        %vm1860 = vcmp.eq.f32.partialorder %v1859, 8.507059e+37
        %v1861 = vand.u32 %v1849, 2147483648
        %v1862 = vor.u32 1.1754944e-38, %v1861
        %v1863 = vsel %vm1860, %v1862, %v1858
        %v1864 = vmul.f32 %v1839, %v1863
        %v1865 = vmin.f32 %v1864, 1.0
        %v1866 = vmax.f32 %v1865, -1.0
        %v1867 = vadd.f32 %v626, 1.0
        %v1868 = vadd.f32 %v666, 1.0
        %v1869 = vadd.f32 %v706, 1.0
        %v1870 = vadd.f32 %v746, 1.0
        %v1871 = vadd.f32 %v786, 1.0
        %v1872 = vadd.f32 %v826, 1.0
        %v1873 = vadd.f32 %v866, 1.0
        %v1874 = vadd.f32 %v906, 1.0
        %v1875 = vadd.f32 %v946, 1.0
        %v1876 = vadd.f32 %v986, 1.0
        %v1877 = vadd.f32 %v1026, 1.0
        %v1878 = vadd.f32 %v1066, 1.0
        %v1879 = vadd.f32 %v1106, 1.0
        %v1880 = vadd.f32 %v1146, 1.0
        %v1881 = vadd.f32 %v1186, 1.0
        %v1882 = vadd.f32 %v1226, 1.0
        %v1883 = vadd.f32 %v1266, 1.0
        %v1884 = vadd.f32 %v1306, 1.0
        %v1885 = vadd.f32 %v1346, 1.0
        %v1886 = vadd.f32 %v1386, 1.0
        %v1887 = vadd.f32 %v1426, 1.0
        %v1888 = vadd.f32 %v1466, 1.0
        %v1889 = vadd.f32 %v1506, 1.0
        %v1890 = vadd.f32 %v1546, 1.0
        %v1891 = vadd.f32 %v1586, 1.0
        %v1892 = vadd.f32 %v1626, 1.0
        %v1893 = vadd.f32 %v1666, 1.0
        %v1894 = vadd.f32 %v1706, 1.0
        %v1895 = vadd.f32 %v1746, 1.0
        %v1896 = vadd.f32 %v1786, 1.0
        %v1897 = vadd.f32 %v1826, 1.0
        %v1898 = vadd.f32 %v1866, 1.0
        %v1899 = vmul.f32 %v523, %v1867
        %v1900 = vmul.f32 %v524, %v1868
        %v1901 = vmul.f32 %v525, %v1869
        %v1902 = vmul.f32 %v526, %v1870
        %v1903 = vmul.f32 %v527, %v1871
        %v1904 = vmul.f32 %v528, %v1872
        %v1905 = vmul.f32 %v529, %v1873
        %v1906 = vmul.f32 %v530, %v1874
        %v1907 = vmul.f32 %v531, %v1875
        %v1908 = vmul.f32 %v532, %v1876
        %v1909 = vmul.f32 %v533, %v1877
        %v1910 = vmul.f32 %v534, %v1878
        %v1911 = vmul.f32 %v535, %v1879
        %v1912 = vmul.f32 %v536, %v1880
        %v1913 = vmul.f32 %v537, %v1881
        %v1914 = vmul.f32 %v538, %v1882
        %v1915 = vmul.f32 %v539, %v1883
        %v1916 = vmul.f32 %v540, %v1884
        %v1917 = vmul.f32 %v541, %v1885
        %v1918 = vmul.f32 %v542, %v1886
        %v1919 = vmul.f32 %v543, %v1887
        %v1920 = vmul.f32 %v544, %v1888
        %v1921 = vmul.f32 %v545, %v1889
        %v1922 = vmul.f32 %v546, %v1890
        %v1923 = vmul.f32 %v547, %v1891
        %v1924 = vmul.f32 %v548, %v1892
        %v1925 = vmul.f32 %v549, %v1893
        %v1926 = vmul.f32 %v550, %v1894
        %v1927 = vmul.f32 %v551, %v1895
        %v1928 = vmul.f32 %v552, %v1896
        %v1929 = vmul.f32 %v553, %v1897
        %v1930 = vmul.f32 %v554, %v1898
        %v1931 = vld [vmem:[#allocation2] sm:$0xff]
        %v1932 = vld [vmem:[#allocation2 + $0x8] sm:$0xff]
        %v1933 = vld [vmem:[#allocation2 + $0x10] sm:$0xff]
        %v1934 = vld [vmem:[#allocation2 + $0x18] sm:$0xff]
        %v1935 = vld [vmem:[#allocation2 + $0x20] sm:$0xff]
        %v1936 = vld [vmem:[#allocation2 + $0x28] sm:$0xff]
        %v1937 = vld [vmem:[#allocation2 + $0x30] sm:$0xff]
        %v1938 = vld [vmem:[#allocation2 + $0x38] sm:$0xff]
        %v1939 = vld [vmem:[#allocation2 + $0x40] sm:$0xff]
        %v1940 = vld [vmem:[#allocation2 + $0x48] sm:$0xff]
        %v1941 = vld [vmem:[#allocation2 + $0x50] sm:$0xff]
        %v1942 = vld [vmem:[#allocation2 + $0x58] sm:$0xff]
        %v1943 = vld [vmem:[#allocation2 + $0x60] sm:$0xff]
        %v1944 = vld [vmem:[#allocation2 + $0x68] sm:$0xff]
        %v1945 = vld [vmem:[#allocation2 + $0x70] sm:$0xff]
        %v1946 = vld [vmem:[#allocation2 + $0x78] sm:$0xff]
        %v1947 = vld [vmem:[#allocation2 + $0x80] sm:$0xff]
        %v1948 = vld [vmem:[#allocation2 + $0x88] sm:$0xff]
        %v1949 = vld [vmem:[#allocation2 + $0x90] sm:$0xff]
        %v1950 = vld [vmem:[#allocation2 + $0x98] sm:$0xff]
        %v1951 = vld [vmem:[#allocation2 + $0xa0] sm:$0xff]
        %v1952 = vld [vmem:[#allocation2 + $0xa8] sm:$0xff]
        %v1953 = vld [vmem:[#allocation2 + $0xb0] sm:$0xff]
        %v1954 = vld [vmem:[#allocation2 + $0xb8] sm:$0xff]
        %v1955 = vld [vmem:[#allocation2 + $0xc0] sm:$0xff]
        %v1956 = vld [vmem:[#allocation2 + $0xc8] sm:$0xff]
        %v1957 = vld [vmem:[#allocation2 + $0xd0] sm:$0xff]
        %v1958 = vld [vmem:[#allocation2 + $0xd8] sm:$0xff]
        %v1959 = vld [vmem:[#allocation2 + $0xe0] sm:$0xff]
        %v1960 = vld [vmem:[#allocation2 + $0xe8] sm:$0xff]
        %v1961 = vld [vmem:[#allocation2 + $0xf0] sm:$0xff]
        %v1962 = vld [vmem:[#allocation2 + $0xf8] sm:$0xff]
        %v1963 = vld [vmem:[#allocation8] sm:$0xff]
        %v1964 = vld [vmem:[#allocation8 + $0x8] sm:$0xff]
        %v1965 = vld [vmem:[#allocation8 + $0x10] sm:$0xff]
        %v1966 = vld [vmem:[#allocation8 + $0x18] sm:$0xff]
        %v1967 = vld [vmem:[#allocation8 + $0x20] sm:$0xff]
        %v1968 = vld [vmem:[#allocation8 + $0x28] sm:$0xff]
        %v1969 = vld [vmem:[#allocation8 + $0x30] sm:$0xff]
        %v1970 = vld [vmem:[#allocation8 + $0x38] sm:$0xff]
        %v1971 = vld [vmem:[#allocation8 + $0x40] sm:$0xff]
        %v1972 = vld [vmem:[#allocation8 + $0x48] sm:$0xff]
        %v1973 = vld [vmem:[#allocation8 + $0x50] sm:$0xff]
        %v1974 = vld [vmem:[#allocation8 + $0x58] sm:$0xff]
        %v1975 = vld [vmem:[#allocation8 + $0x60] sm:$0xff]
        %v1976 = vld [vmem:[#allocation8 + $0x68] sm:$0xff]
        %v1977 = vld [vmem:[#allocation8 + $0x70] sm:$0xff]
        %v1978 = vld [vmem:[#allocation8 + $0x78] sm:$0xff]
        %1979 = vmatpush.msra.mxu0 %v1978
        %1980 = vmatpush.msra.mxu0 %v1977
        %1981 = vmatpush.msra.mxu0 %v1976
        %1982 = vmatpush.msra.mxu0 %v1975
        %1983 = vmatpush.msra.mxu0 %v1974
        %1984 = vmatpush.msra.mxu0 %v1973
        %1985 = vmatpush.msra.mxu0 %v1972
        %1986 = vmatpush.msra.mxu0 %v1971
        %1987 = vmatpush.msra.mxu0 %v1970
        %1988 = vmatpush.msra.mxu0 %v1969
        %1989 = vmatpush.msra.mxu0 %v1968
        %1990 = vmatpush.msra.mxu0 %v1967
        %1991 = vmatpush.msra.mxu0 %v1966
        %1992 = vmatpush.msra.mxu0 %v1965
        %1993 = vmatpush.msra.mxu0 %v1964
        %1994 = vmatpush.msra.mxu0 %v1963
        %1995 = vmatmul.f32.gmra.mxu0 %v1899
        %v1996 = vpop.f32.mrf.mxu0
        %v1997 = vadd.f32 0.0, %v1996
        %1998 = vmatmul.f32.gmra.mxu0 %v1900
        %v1999 = vpop.f32.mrf.mxu0
        %v2000 = vadd.f32 0.0, %v1999
        %2001 = vmatmul.f32.gmra.mxu0 %v1901
        %v2002 = vpop.f32.mrf.mxu0
        %v2003 = vadd.f32 0.0, %v2002
        %2004 = vmatmul.f32.gmra.mxu0 %v1902
        %v2005 = vpop.f32.mrf.mxu0
        %v2006 = vadd.f32 0.0, %v2005
        %2007 = vmatmul.f32.gmra.mxu0 %v1903
        %v2008 = vpop.f32.mrf.mxu0
        %v2009 = vadd.f32 0.0, %v2008
        %2010 = vmatmul.f32.gmra.mxu0 %v1904
        %v2011 = vpop.f32.mrf.mxu0
        %v2012 = vadd.f32 0.0, %v2011
        %2013 = vmatmul.f32.gmra.mxu0 %v1905
        %v2014 = vpop.f32.mrf.mxu0
        %v2015 = vadd.f32 0.0, %v2014
        %2016 = vmatmul.f32.gmra.mxu0 %v1906
        %v2017 = vpop.f32.mrf.mxu0
        %v2018 = vadd.f32 0.0, %v2017
        %2019 = vmatmul.f32.gmra.mxu0 %v1907
        %v2020 = vpop.f32.mrf.mxu0
        %v2021 = vadd.f32 0.0, %v2020
        %2022 = vmatmul.f32.gmra.mxu0 %v1908
        %v2023 = vpop.f32.mrf.mxu0
        %v2024 = vadd.f32 0.0, %v2023
        %2025 = vmatmul.f32.gmra.mxu0 %v1909
        %v2026 = vpop.f32.mrf.mxu0
        %v2027 = vadd.f32 0.0, %v2026
        %2028 = vmatmul.f32.gmra.mxu0 %v1910
        %v2029 = vpop.f32.mrf.mxu0
        %v2030 = vadd.f32 0.0, %v2029
        %2031 = vmatmul.f32.gmra.mxu0 %v1911
        %v2032 = vpop.f32.mrf.mxu0
        %v2033 = vadd.f32 0.0, %v2032
        %2034 = vmatmul.f32.gmra.mxu0 %v1912
        %v2035 = vpop.f32.mrf.mxu0
        %v2036 = vadd.f32 0.0, %v2035
        %2037 = vmatmul.f32.gmra.mxu0 %v1913
        %v2038 = vpop.f32.mrf.mxu0
        %v2039 = vadd.f32 0.0, %v2038
        %2040 = vmatmul.f32.gmra.mxu0 %v1914
        %v2041 = vpop.f32.mrf.mxu0
        %v2042 = vadd.f32 0.0, %v2041
        %2043 = vmatmul.f32.gmra.mxu0 %v1915
        %v2044 = vpop.f32.mrf.mxu0
        %v2045 = vadd.f32 0.0, %v2044
        %2046 = vmatmul.f32.gmra.mxu0 %v1916
        %v2047 = vpop.f32.mrf.mxu0
        %v2048 = vadd.f32 0.0, %v2047
        %2049 = vmatmul.f32.gmra.mxu0 %v1917
        %v2050 = vpop.f32.mrf.mxu0
        %v2051 = vadd.f32 0.0, %v2050
        %2052 = vmatmul.f32.gmra.mxu0 %v1918
        %v2053 = vpop.f32.mrf.mxu0
        %v2054 = vadd.f32 0.0, %v2053
        %2055 = vmatmul.f32.gmra.mxu0 %v1919
        %v2056 = vpop.f32.mrf.mxu0
        %v2057 = vadd.f32 0.0, %v2056
        %2058 = vmatmul.f32.gmra.mxu0 %v1920
        %v2059 = vpop.f32.mrf.mxu0
        %v2060 = vadd.f32 0.0, %v2059
        %2061 = vmatmul.f32.gmra.mxu0 %v1921
        %v2062 = vpop.f32.mrf.mxu0
        %v2063 = vadd.f32 0.0, %v2062
        %2064 = vmatmul.f32.gmra.mxu0 %v1922
        %v2065 = vpop.f32.mrf.mxu0
        %v2066 = vadd.f32 0.0, %v2065
        %2067 = vmatmul.f32.gmra.mxu0 %v1923
        %v2068 = vpop.f32.mrf.mxu0
        %v2069 = vadd.f32 0.0, %v2068
        %2070 = vmatmul.f32.gmra.mxu0 %v1924
        %v2071 = vpop.f32.mrf.mxu0
        %v2072 = vadd.f32 0.0, %v2071
        %2073 = vmatmul.f32.gmra.mxu0 %v1925
        %v2074 = vpop.f32.mrf.mxu0
        %v2075 = vadd.f32 0.0, %v2074
        %2076 = vmatmul.f32.gmra.mxu0 %v1926
        %v2077 = vpop.f32.mrf.mxu0
        %v2078 = vadd.f32 0.0, %v2077
        %2079 = vmatmul.f32.gmra.mxu0 %v1927
        %v2080 = vpop.f32.mrf.mxu0
        %v2081 = vadd.f32 0.0, %v2080
        %2082 = vmatmul.f32.gmra.mxu0 %v1928
        %v2083 = vpop.f32.mrf.mxu0
        %v2084 = vadd.f32 0.0, %v2083
        %2085 = vmatmul.f32.gmra.mxu0 %v1929
        %v2086 = vpop.f32.mrf.mxu0
        %v2087 = vadd.f32 0.0, %v2086
        %2088 = vmatmul.f32.gmra.mxu0 %v1930
        %v2089 = vpop.f32.mrf.mxu0
        %v2090 = vadd.f32 0.0, %v2089
        %2091 = vdwg.mxu0
        %v2092 = vadd.f32 %v1931, %v1997
        %v2093 = vadd.f32 %v1932, %v2000
        %v2094 = vadd.f32 %v1933, %v2003
        %v2095 = vadd.f32 %v1934, %v2006
        %v2096 = vadd.f32 %v1935, %v2009
        %v2097 = vadd.f32 %v1936, %v2012
        %v2098 = vadd.f32 %v1937, %v2015
        %v2099 = vadd.f32 %v1938, %v2018
        %v2100 = vadd.f32 %v1939, %v2021
        %v2101 = vadd.f32 %v1940, %v2024
        %v2102 = vadd.f32 %v1941, %v2027
        %v2103 = vadd.f32 %v1942, %v2030
        %v2104 = vadd.f32 %v1943, %v2033
        %v2105 = vadd.f32 %v1944, %v2036
        %v2106 = vadd.f32 %v1945, %v2039
        %v2107 = vadd.f32 %v1946, %v2042
        %v2108 = vadd.f32 %v1947, %v2045
        %v2109 = vadd.f32 %v1948, %v2048
        %v2110 = vadd.f32 %v1949, %v2051
        %v2111 = vadd.f32 %v1950, %v2054
        %v2112 = vadd.f32 %v1951, %v2057
        %v2113 = vadd.f32 %v1952, %v2060
        %v2114 = vadd.f32 %v1953, %v2063
        %v2115 = vadd.f32 %v1954, %v2066
        %v2116 = vadd.f32 %v1955, %v2069
        %v2117 = vadd.f32 %v1956, %v2072
        %v2118 = vadd.f32 %v1957, %v2075
        %v2119 = vadd.f32 %v1958, %v2078
        %v2120 = vadd.f32 %v1959, %v2081
        %v2121 = vadd.f32 %v1960, %v2084
        %v2122 = vadd.f32 %v1961, %v2087
        %v2123 = vadd.f32 %v1962, %v2090
        %2124 = vst [vmem:[#allocation2] sm:$0xff] %v2092
        %2125 = vst [vmem:[#allocation2 + $0x8] sm:$0xff] %v2093
        %2126 = vst [vmem:[#allocation2 + $0x10] sm:$0xff] %v2094
        %2127 = vst [vmem:[#allocation2 + $0x18] sm:$0xff] %v2095
        %2128 = vst [vmem:[#allocation2 + $0x20] sm:$0xff] %v2096
        %2129 = vst [vmem:[#allocation2 + $0x28] sm:$0xff] %v2097
        %2130 = vst [vmem:[#allocation2 + $0x30] sm:$0xff] %v2098
        %2131 = vst [vmem:[#allocation2 + $0x38] sm:$0xff] %v2099
        %2132 = vst [vmem:[#allocation2 + $0x40] sm:$0xff] %v2100
        %2133 = vst [vmem:[#allocation2 + $0x48] sm:$0xff] %v2101
        %2134 = vst [vmem:[#allocation2 + $0x50] sm:$0xff] %v2102
        %2135 = vst [vmem:[#allocation2 + $0x58] sm:$0xff] %v2103
        %2136 = vst [vmem:[#allocation2 + $0x60] sm:$0xff] %v2104
        %2137 = vst [vmem:[#allocation2 + $0x68] sm:$0xff] %v2105
        %2138 = vst [vmem:[#allocation2 + $0x70] sm:$0xff] %v2106
        %2139 = vst [vmem:[#allocation2 + $0x78] sm:$0xff] %v2107
        %2140 = vst [vmem:[#allocation2 + $0x80] sm:$0xff] %v2108
        %2141 = vst [vmem:[#allocation2 + $0x88] sm:$0xff] %v2109
        %2142 = vst [vmem:[#allocation2 + $0x90] sm:$0xff] %v2110
        %2143 = vst [vmem:[#allocation2 + $0x98] sm:$0xff] %v2111
        %2144 = vst [vmem:[#allocation2 + $0xa0] sm:$0xff] %v2112
        %2145 = vst [vmem:[#allocation2 + $0xa8] sm:$0xff] %v2113
        %2146 = vst [vmem:[#allocation2 + $0xb0] sm:$0xff] %v2114
        %2147 = vst [vmem:[#allocation2 + $0xb8] sm:$0xff] %v2115
        %2148 = vst [vmem:[#allocation2 + $0xc0] sm:$0xff] %v2116
        %2149 = vst [vmem:[#allocation2 + $0xc8] sm:$0xff] %v2117
        %2150 = vst [vmem:[#allocation2 + $0xd0] sm:$0xff] %v2118
        %2151 = vst [vmem:[#allocation2 + $0xd8] sm:$0xff] %v2119
        %2152 = vst [vmem:[#allocation2 + $0xe0] sm:$0xff] %v2120
        %2153 = vst [vmem:[#allocation2 + $0xe8] sm:$0xff] %v2121
        %2154 = vst [vmem:[#allocation2 + $0xf0] sm:$0xff] %v2122
        %2155 = vst [vmem:[#allocation2 + $0xf8] sm:$0xff] %v2123
        // Predicated region
        $region57: #{tpu_custom_call.1} parent=39 // pred_check
          %p2156 = pneg %p322
        $region58: #{tpu_custom_call.1} parent=39 // pred_check_branch
          %2158 = sbr.rel (%p2156) target = $region60
        $region59: #{tpu_custom_call.1} parent=39 // pred_region
          %v2159 = vld [vmem:[#allocation2] sm:$0xff]
          %v2160 = vld [vmem:[#allocation2 + $0x8] sm:$0xff]
          %v2161 = vld [vmem:[#allocation2 + $0x10] sm:$0xff]
          %v2162 = vld [vmem:[#allocation2 + $0x18] sm:$0xff]
          %v2163 = vld [vmem:[#allocation2 + $0x20] sm:$0xff]
          %v2164 = vld [vmem:[#allocation2 + $0x28] sm:$0xff]
          %v2165 = vld [vmem:[#allocation2 + $0x30] sm:$0xff]
          %v2166 = vld [vmem:[#allocation2 + $0x38] sm:$0xff]
          %v2167 = vld [vmem:[#allocation2 + $0x40] sm:$0xff]
          %v2168 = vld [vmem:[#allocation2 + $0x48] sm:$0xff]
          %v2169 = vld [vmem:[#allocation2 + $0x50] sm:$0xff]
          %v2170 = vld [vmem:[#allocation2 + $0x58] sm:$0xff]
          %v2171 = vld [vmem:[#allocation2 + $0x60] sm:$0xff]
          %v2172 = vld [vmem:[#allocation2 + $0x68] sm:$0xff]
          %v2173 = vld [vmem:[#allocation2 + $0x70] sm:$0xff]
          %v2174 = vld [vmem:[#allocation2 + $0x78] sm:$0xff]
          %v2175 = vld [vmem:[#allocation2 + $0x80] sm:$0xff]
          %v2176 = vld [vmem:[#allocation2 + $0x88] sm:$0xff]
          %v2177 = vld [vmem:[#allocation2 + $0x90] sm:$0xff]
          %v2178 = vld [vmem:[#allocation2 + $0x98] sm:$0xff]
          %v2179 = vld [vmem:[#allocation2 + $0xa0] sm:$0xff]
          %v2180 = vld [vmem:[#allocation2 + $0xa8] sm:$0xff]
          %v2181 = vld [vmem:[#allocation2 + $0xb0] sm:$0xff]
          %v2182 = vld [vmem:[#allocation2 + $0xb8] sm:$0xff]
          %v2183 = vld [vmem:[#allocation2 + $0xc0] sm:$0xff]
          %v2184 = vld [vmem:[#allocation2 + $0xc8] sm:$0xff]
          %v2185 = vld [vmem:[#allocation2 + $0xd0] sm:$0xff]
          %v2186 = vld [vmem:[#allocation2 + $0xd8] sm:$0xff]
          %v2187 = vld [vmem:[#allocation2 + $0xe0] sm:$0xff]
          %v2188 = vld [vmem:[#allocation2 + $0xe8] sm:$0xff]
          %v2189 = vld [vmem:[#allocation2 + $0xf0] sm:$0xff]
          %v2190 = vld [vmem:[#allocation2 + $0xf8] sm:$0xff]
          %v2191 = vld [vmem:[%s4] sm:$0x1]
          %v2193 = vperm.slane %v2191, 0
          %v2195 = vadd.f32 %v2159, %v2193
          %v2196 = vadd.f32 %v2160, %v2193
          %v2197 = vadd.f32 %v2161, %v2193
          %v2198 = vadd.f32 %v2162, %v2193
          %v2199 = vadd.f32 %v2163, %v2193
          %v2200 = vadd.f32 %v2164, %v2193
          %v2201 = vadd.f32 %v2165, %v2193
          %v2202 = vadd.f32 %v2166, %v2193
          %v2203 = vadd.f32 %v2167, %v2193
          %v2204 = vadd.f32 %v2168, %v2193
          %v2205 = vadd.f32 %v2169, %v2193
          %v2206 = vadd.f32 %v2170, %v2193
          %v2207 = vadd.f32 %v2171, %v2193
          %v2208 = vadd.f32 %v2172, %v2193
          %v2209 = vadd.f32 %v2173, %v2193
          %v2210 = vadd.f32 %v2174, %v2193
          %v2211 = vadd.f32 %v2175, %v2193
          %v2212 = vadd.f32 %v2176, %v2193
          %v2213 = vadd.f32 %v2177, %v2193
          %v2214 = vadd.f32 %v2178, %v2193
          %v2215 = vadd.f32 %v2179, %v2193
          %v2216 = vadd.f32 %v2180, %v2193
          %v2217 = vadd.f32 %v2181, %v2193
          %v2218 = vadd.f32 %v2182, %v2193
          %v2219 = vadd.f32 %v2183, %v2193
          %v2220 = vadd.f32 %v2184, %v2193
          %v2221 = vadd.f32 %v2185, %v2193
          %v2222 = vadd.f32 %v2186, %v2193
          %v2223 = vadd.f32 %v2187, %v2193
          %v2224 = vadd.f32 %v2188, %v2193
          %v2225 = vadd.f32 %v2189, %v2193
          %v2226 = vadd.f32 %v2190, %v2193
          %2227 = vst [vmem:[%s315] sm:$0xff] %v2195
          %2228 = vst [vmem:[%s315 + $0x8] sm:$0xff] %v2196
          %2229 = vst [vmem:[%s315 + $0x10] sm:$0xff] %v2197
          %2230 = vst [vmem:[%s315 + $0x18] sm:$0xff] %v2198
          %2231 = vst [vmem:[%s315 + $0x20] sm:$0xff] %v2199
          %2232 = vst [vmem:[%s315 + $0x28] sm:$0xff] %v2200
          %2233 = vst [vmem:[%s315 + $0x30] sm:$0xff] %v2201
          %2234 = vst [vmem:[%s315 + $0x38] sm:$0xff] %v2202
          %2235 = vst [vmem:[%s315 + $0x40] sm:$0xff] %v2203
          %2236 = vst [vmem:[%s315 + $0x48] sm:$0xff] %v2204
          %2237 = vst [vmem:[%s315 + $0x50] sm:$0xff] %v2205
          %2238 = vst [vmem:[%s315 + $0x58] sm:$0xff] %v2206
          %2239 = vst [vmem:[%s315 + $0x60] sm:$0xff] %v2207
          %2240 = vst [vmem:[%s315 + $0x68] sm:$0xff] %v2208
          %2241 = vst [vmem:[%s315 + $0x70] sm:$0xff] %v2209
          %2242 = vst [vmem:[%s315 + $0x78] sm:$0xff] %v2210
          %2243 = vst [vmem:[%s315 + $0x80] sm:$0xff] %v2211
          %2244 = vst [vmem:[%s315 + $0x88] sm:$0xff] %v2212
          %2245 = vst [vmem:[%s315 + $0x90] sm:$0xff] %v2213
          %2246 = vst [vmem:[%s315 + $0x98] sm:$0xff] %v2214
          %2247 = vst [vmem:[%s315 + $0xa0] sm:$0xff] %v2215
          %2248 = vst [vmem:[%s315 + $0xa8] sm:$0xff] %v2216
          %2249 = vst [vmem:[%s315 + $0xb0] sm:$0xff] %v2217
          %2250 = vst [vmem:[%s315 + $0xb8] sm:$0xff] %v2218
          %2251 = vst [vmem:[%s315 + $0xc0] sm:$0xff] %v2219
          %2252 = vst [vmem:[%s315 + $0xc8] sm:$0xff] %v2220
          %2253 = vst [vmem:[%s315 + $0xd0] sm:$0xff] %v2221
          %2254 = vst [vmem:[%s315 + $0xd8] sm:$0xff] %v2222
          %2255 = vst [vmem:[%s315 + $0xe0] sm:$0xff] %v2223
          %2256 = vst [vmem:[%s315 + $0xe8] sm:$0xff] %v2224
          %2257 = vst [vmem:[%s315 + $0xf0] sm:$0xff] %v2225
          %2258 = vst [vmem:[%s315 + $0xf8] sm:$0xff] %v2226
        $region60: #{tpu_custom_call.1} parent=39 // pred_fallthru
          _
        %s2259 = sand.u32 %s168, 1
        %s2260 = scalar_lea.sflag [#allocation5], %s2259
        %s2261 = sand.u32 %s168, 1
        %s2262 = smul.addr %s2261, 256
        %s2263 = scalar_lea.vmem [#allocation9], %s2262
        // Predicated region
        $region61: #{tpu_custom_call.1} parent=39 // pred_check
          %p2264 = pneg %p178
        $region62: #{tpu_custom_call.1} parent=39 // pred_check_branch
          %2266 = sbr.rel (%p2264) target = $region64
        $region63: #{tpu_custom_call.1} parent=39 // pred_region
          %s2267 = smul.u32 32, %s27
          %2269 = vsyncadd %s2260, 0
          %s2270 = smul.addr %s2267, 8
          %s2271 = scalar_lea.hbm %s5, %s2270
          %s2272 = sshll.u32 %s2263, 4
          %s2273 = int_to_ptr.vmem [resolvable:$true] %s2272
          %s2274 = sshll.u32 %s2271, 4
          %s2275 = int_to_ptr.hbm [resolvable:$true] %s2274
          %2280 = dma.vmem_to_hbm [thread:$0]  %s2273, 4096, %s2275, %s2260, 128, 128, 8
        $region64: #{tpu_custom_call.1} parent=39 // pred_fallthru
          _
      $region40: #{tpu_custom_call.1} parent=5 // pred_fallthru
        _
      %p2281 = scmp.le.s32.totalorder 2, %s18
      // Predicated region
      $region65: #{tpu_custom_call.1} parent=5 // pred_check
        %p2282 = pneg %p2281
      $region66: #{tpu_custom_call.1} parent=5 // pred_check_branch
        %2284 = sbr.rel (%p2282) target = $region68
      $region67: #{tpu_custom_call.1} parent=5 // pred_region
        %s2285 = ssub.s32 %s18, 2
        // Predicated region
        $region69: #{tpu_custom_call.1} parent=67 // pred_check
          %p2286 = pneg %p184
        $region70: #{tpu_custom_call.1} parent=67 // pred_check_branch
          %2288 = sbr.rel (%p2286) target = $region72
        $region71: #{tpu_custom_call.1} parent=67 // pred_region
          %s2289 = sand.u32 %s169, 1
          %s2290 = scalar_lea.sflag [#allocation5], %s2289
          %s2291 = sand.u32 %s169, 1
          %s2292 = smul.addr %s2291, 256
          %s2293 = scalar_lea.vmem [#allocation9], %s2292
          %2295 = dma.done %s2290, 4096
        $region72: #{tpu_custom_call.1} parent=67 // pred_fallthru
          _
      $region68: #{tpu_custom_call.1} parent=5 // pred_fallthru
        _
    $region6: #{tpu_custom_call.1} parent=1 // loop_footer
      %s22 = sadd.s32 1, %s18
    $region7: #{tpu_custom_call.1} parent=1 // loop_footer_branch
      %17 = sbr.rel target = $region3
    $region8: #{tpu_custom_call.1} parent=1 // loop_exit
      _
    %2296 = vsyncpa [#allocation4], 1
    %s2297 = scalar_lea.sflag [#allocation4], 1
    %2298 = vsyncpa %s2297, 1
    %2299 = vsyncpa [#allocation7], 1
    %2300 = vsyncpa [#allocation5], 1
    %s2301 = scalar_lea.sflag [#allocation5], 1
    %2302 = vsyncpa %s2301, 1

</llo_original>
